<compile_context>
chip_gen: v5e
topology: v5e:2x2
jax: 0.10.0
libtpu: 0.0.40
codegen_flags: <defaults>
</compile_context>

<pallas_src>
import jax
import jax.numpy as jnp
from jax.experimental import pallas as pl
from jax.experimental.pallas import tpu as pltpu


# ----------------------------------------------------------------------------
# Kernel
# ----------------------------------------------------------------------------
def _make_mlp_kernel(l1_vpu, l2_vpu, l3_vpu):
    """Build the kernel; l*_vpu are static Python bools chosen by the wrapper."""

    def _layer(w_ref, h, use_vpu):
        if use_vpu:
            # Tiny contraction: unrolled VPU broadcast FMAs in f32.  Avoids a
            # padded MXU pass (<2% array utilization for K<=32 on v6e/v7x) and
            # the f32<->bf16 casts around it; VALU slots are idle in this
            # memory-bound kernel so this work is effectively free.
            w = w_ref[...].astype(jnp.float32)            # [M, K] (tiny)
            hf = h.astype(jnp.float32)                    # [K, TILE_Q]
            k = w.shape[1]
            acc = w[:, 0:1] * hf[0:1, :]                  # [M, TILE_Q]
            for kk in range(1, k):
                acc = acc + w[:, kk:kk + 1] * hf[kk:kk + 1, :]
            return acc                                    # f32
        # MXU path: operands in the weight dtype (bf16 by default), f32 accum.
        return jnp.dot(w_ref[...], h.astype(w_ref.dtype),
                       preferred_element_type=jnp.float32)

    def kernel(x_ref, w1_ref, b1_ref, w2_ref, b2_ref, w3_ref, b3_ref, o_ref):
        x = x_ref[...]                                    # [input_dim, TILE_Q]

        # Layer 1: Linear(input_dim -> hidden) + ReLU
        h = _layer(w1_ref, x, l1_vpu)
        h = jnp.maximum(h + b1_ref[...], 0.0)             # f32 bias-add / ReLU

        # Layer 2: Linear(hidden -> hidden) + ReLU   (dropout p=0 -> identity)
        h = _layer(w2_ref, h, l2_vpu)
        h = jnp.maximum(h + b2_ref[...], 0.0)

        # Layer 3: Linear(hidden -> output_dim)      (dropout p=0 -> identity)
        out = _layer(w3_ref, h, l3_vpu)
        out = out + b3_ref[...]

        o_ref[...] = out.astype(o_ref.dtype)              # [output_dim, TILE_Q]

    return kernel


# ----------------------------------------------------------------------------
# Tiling / resource helpers
# ----------------------------------------------------------------------------
def _choose_tile_q(q, tile_q, bs):
    """Lane-dense q tile: a multiple of 128 that divides Q (or the full extent)."""
    if q % 128 != 0:
        return q                      # full extent: always correct, lane-dense enough
    if tile_q is None:
        # Aim for multi-MiB x/out tiles so the ~0.35 us per-grid-step overhead
        # is amortized and stores are long unmasked vst runs.
        tile_q = 16384
    tile_q = max(128, min(int(tile_q), q))
    tile_q = (tile_q // 128) * 128
    # v7x has 2 TensorCores: when bs == 1, make sure the q-tile axis provides
    # at least 2 parallel grid steps so both cores get work ("parallel" is a
    # no-op on single-TC v5e/v6e, so no downside there).
    if bs == 1 and tile_q >= q and q >= 256:
        tile_q = (q // 2 // 128) * 128
    # Prefer an exact divisor of q so no partial (garbage-lane) tiles exist.
    while tile_q > 128 and q % tile_q != 0:
        tile_q -= 128
    if q % tile_q != 0:
        tile_q = q
    return tile_q


def _vmem_capacity_bytes():
    try:
        return int(pltpu.get_tpu_info().vmem_capacity_bytes)
    except Exception:
        return 64 * 1024 * 1024       # conservative (v7x per-core VMEM)


def _resident_spec(shape, single_buffer):
    """BlockSpec for a grid-invariant (weight/bias) operand."""
    index_map = lambda b, qi: (0, 0)
    if single_buffer:
        # Weights never change block index; don't double-buffer them (matters
        # on v7x where VMEM is 64 MiB).  Fall back gracefully if unsupported.
        try:
            return pl.BlockSpec(shape, index_map, pipeline_mode=pl.Buffered(1))
        except (AttributeError, TypeError):
            pass
    return pl.BlockSpec(shape, index_map)


# ----------------------------------------------------------------------------
# Wrapper
# ----------------------------------------------------------------------------
def mlp_forward(x, params, *, tile_q=None, compute_dtype=None, out_dtype=None):
    """x: [BS, input_dim, Q] -> [BS, output_dim, Q]  (matches the PyTorch module).

    params: (w1, b1, w2, b2, w3, b3) with weights in PyTorch layout [out, in].
    compute_dtype: dtype of MXU operands (default bf16); accumulation is f32.
    out_dtype: output storage dtype (default: x.dtype).
    """
    w1, b1, w2, b2, w3, b3 = params
    bs, input_dim, q = x.shape
    hidden_dim = w1.shape[0]
    output_dim = w3.shape[0]

    if compute_dtype is None:
        compute_dtype = jnp.bfloat16          # bf16 MXU operands by default
    if out_dtype is None:
        out_dtype = x.dtype

    tile_q = _choose_tile_q(q, tile_q, bs)

    # Choose VPU (broadcast-FMA) path for tiny contractions, MXU otherwise.
    def _use_vpu(m, k):
        return (m * k) <= 512
    l1_vpu = _use_vpu(hidden_dim, input_dim)
    l2_vpu = _use_vpu(hidden_dim, hidden_dim)
    l3_vpu = _use_vpu(output_dim, hidden_dim)

    # VPU-path weights stay f32 (exact FMAs, negligible bytes); MXU-path weights
    # are cast once to the compute dtype.  Biases f32, shape [dim, 1] so they
    # broadcast over the lane axis in-kernel.
    w1c = w1.astype(jnp.float32 if l1_vpu else compute_dtype)
    w2c = w2.astype(jnp.float32 if l2_vpu else compute_dtype)
    w3c = w3.astype(jnp.float32 if l3_vpu else compute_dtype)
    b1c = b1.reshape(hidden_dim, 1).astype(jnp.float32)
    b2c = b2.reshape(hidden_dim, 1).astype(jnp.float32)
    b3c = b3.reshape(output_dim, 1).astype(jnp.float32)

    grid = (bs, pl.cdiv(q, tile_q))

    # --- VMEM budgeting -------------------------------------------------------
    x_item = jnp.dtype(x.dtype).itemsize
    o_item = jnp.dtype(out_dtype).itemsize
    weight_bytes = sum(int(a.size) * jnp.dtype(a.dtype).itemsize
                       for a in (w1c, b1c, w2c, b2c, w3c, b3c))
    single_buffer_weights = weight_bytes > 4 * 1024 * 1024
    act_tile_bytes = input_dim * tile_q * x_item + output_dim * tile_q * o_item
    interm_bytes = 2 * hidden_dim * tile_q * 4
    vmem_est = (2 * act_tile_bytes
                + (1 if single_buffer_weights else 2) * weight_bytes
                + interm_bytes)

    compiler_kwargs = dict(dimension_semantics=("parallel", "parallel"))
    if vmem_est > 8 * 1024 * 1024:
        cap = int(0.65 * _vmem_capacity_bytes())
        compiler_kwargs["vmem_limit_bytes"] = max(
            16 * 1024 * 1024, min(int(2 * vmem_est), cap))

    flops = 2 * bs * q * (input_dim * hidden_dim
                          + hidden_dim * hidden_dim
                          + hidden_dim * output_dim)
    bytes_accessed = (x.size * x_item
                      + bs * output_dim * q * o_item
                      + weight_bytes)
    cost = pl.CostEstimate(flops=int(flops), transcendentals=0,
                           bytes_accessed=int(bytes_accessed))

    kernel = _make_mlp_kernel(l1_vpu, l2_vpu, l3_vpu)

    out = pl.pallas_call(
        kernel,
        out_shape=jax.ShapeDtypeStruct((bs, output_dim, q), out_dtype),
        grid_spec=pltpu.PrefetchScalarGridSpec(
            num_scalar_prefetch=0,
            grid=grid,
            in_specs=[
                # x: batch dim squeezed, kernel sees [input_dim, TILE_Q]
                pl.BlockSpec((None, input_dim, tile_q), lambda b, qi: (b, 0, qi)),
                # weights / biases: full arrays, grid-invariant
                _resident_spec((hidden_dim, input_dim), single_buffer_weights),
                _resident_spec((hidden_dim, 1), single_buffer_weights),
                _resident_spec((hidden_dim, hidden_dim), single_buffer_weights),
                _resident_spec((hidden_dim, 1), single_buffer_weights),
                _resident_spec((output_dim, hidden_dim), single_buffer_weights),
                _resident_spec((output_dim, 1), single_buffer_weights),
            ],
            out_specs=pl.BlockSpec((None, output_dim, tile_q),
                                   lambda b, qi: (b, 0, qi)),
        ),
        compiler_params=pltpu.CompilerParams(**compiler_kwargs),
        cost_estimate=cost,
    )(x, w1c, b1c, w2c, b2c, w3c, b3c)

    return out


# ----------------------------------------------------------------------------
# Init + reference
# ----------------------------------------------------------------------------
def init_mlp_params(key, input_dim, hidden_dim, output_dim):
    """Deterministic init mimicking nn.Linear's uniform(-1/sqrt(fan_in), +) init.

    Weights are stored in PyTorch layout: [out_dim, in_dim].
    """
    keys = jax.random.split(key, 6)

    def linear(kw, kb, fan_in, fan_out):
        bound = 1.0 / float(fan_in) ** 0.5
        w = jax.random.uniform(kw, (fan_out, fan_in), jnp.float32, -bound, bound)
        b = jax.random.uniform(kb, (fan_out,), jnp.float32, -bound, bound)
        return w, b

    w1, b1 = linear(keys[0], keys[1], input_dim, hidden_dim)
    w2, b2 = linear(keys[2], keys[3], hidden_dim, hidden_dim)
    w3, b3 = linear(keys[4], keys[5], hidden_dim, output_dim)
    return (w1, b1, w2, b2, w3, b3)


def mlp_reference(x, params):
    """Pure-JAX reference matching the PyTorch forward (for a sanity check)."""
    w1, b1, w2, b2, w3, b3 = params
    h = jnp.transpose(x, (0, 2, 1))           # [BS, Q, input_dim]
    h = jnp.maximum(h @ w1.T + b1, 0.0)
    h = jnp.maximum(h @ w2.T + b2, 0.0)
    h = h @ w3.T + b3
    return jnp.transpose(h, (0, 2, 1))        # [BS, output_dim, Q]


if __name__ == "__main__":
    # MLP(input_dim=4, hidden_dim=32, output_dim=4, num_layers=3, dropout=0.0)
    BS, INPUT_DIM, Q = 2, 4, 512
    HIDDEN_DIM, OUTPUT_DIM = 32, 4

    key = jax.random.PRNGKey(0)
    k_params, k_x = jax.random.split(key)
    params = init_mlp_params(k_params, INPUT_DIM, HIDDEN_DIM, OUTPUT_DIM)
    x = jax.random.normal(k_x, (BS, INPUT_DIM, Q), dtype=jnp.float32)

    ref = mlp_reference(x, params)

    # Default path: tiny layers on the VPU in f32, hidden x hidden on the MXU
    # with bf16 operands, single full-Q tile per batch item.
    out_default = jax.block_until_ready(mlp_forward(x, params))
    assert out_default.shape == (BS, OUTPUT_DIM, Q), out_default.shape
    assert jnp.allclose(out_default, ref, atol=5e-2, rtol=5e-2), \
        "default (bf16 MXU) path mismatch vs reference"

    # Explicit f32 MXU-operand path with multiple q tiles (exercises the 2-D grid).
    out_f32 = jax.block_until_ready(
        mlp_forward(x, params, tile_q=128, compute_dtype=jnp.float32))
    assert out_f32.shape == (BS, OUTPUT_DIM, Q), out_f32.shape
    assert jnp.allclose(out_f32, ref, atol=1e-4, rtol=1e-4), \
        "f32 path mismatch vs reference"

    print("KERNEL_OK")
</pallas_src>

<mosaic_0001>
module attributes {stable_mosaic.version = 11 : i64} {
  func.func @kernel(%arg0: i32, %arg1: i32, %arg2: memref<1x4x512xf32, #tpu.memory_space<vmem>>, %arg3: memref<32x4xf32, #tpu.memory_space<vmem>>, %arg4: memref<32x1xf32, #tpu.memory_space<vmem>>, %arg5: memref<32x32xbf16, #tpu.memory_space<vmem>>, %arg6: memref<32x1xf32, #tpu.memory_space<vmem>>, %arg7: memref<4x32xf32, #tpu.memory_space<vmem>>, %arg8: memref<4x1xf32, #tpu.memory_space<vmem>>, %arg9: memref<1x4x512xf32, #tpu.memory_space<vmem>>) attributes {dimension_semantics = [#tpu.dimension_semantics<parallel>, #tpu.dimension_semantics<parallel>], iteration_bounds = array<i64: 2, 1>, scalar_prefetch = 0 : i64, scratch_operands = 0 : i64, tpu.core_type = #tpu.core_type<tc>, window_params = [{transform_indices = @transform_0, window_bounds = array<i64: 1, 4, 512>}, {pipeline_mode = #tpu.pipeline_mode<synchronous>, transform_indices = @transform_1, window_bounds = array<i64: 32, 4>}, {pipeline_mode = #tpu.pipeline_mode<synchronous>, transform_indices = @transform_2, window_bounds = array<i64: 32, 1>}, {pipeline_mode = #tpu.pipeline_mode<synchronous>, transform_indices = @transform_3, window_bounds = array<i64: 32, 32>}, {pipeline_mode = #tpu.pipeline_mode<synchronous>, transform_indices = @transform_4, window_bounds = array<i64: 32, 1>}, {pipeline_mode = #tpu.pipeline_mode<synchronous>, transform_indices = @transform_5, window_bounds = array<i64: 4, 32>}, {pipeline_mode = #tpu.pipeline_mode<synchronous>, transform_indices = @transform_6, window_bounds = array<i64: 4, 1>}, {transform_indices = @transform_7, window_bounds = array<i64: 1, 4, 512>}]} {
    %c0 = arith.constant 0 : index
    %c0_0 = arith.constant 0 : index
    %c0_1 = arith.constant 0 : index
    %0 = vector.load %arg2[%c0, %c0_0, %c0_1] : memref<1x4x512xf32, #tpu.memory_space<vmem>>, vector<1x4x512xf32>
    %1 = vector.shape_cast %0 : vector<1x4x512xf32> to vector<4x512xf32>
    %c0_2 = arith.constant 0 : index
    %c0_3 = arith.constant 0 : index
    %2 = vector.load %arg3[%c0_2, %c0_3] : memref<32x4xf32, #tpu.memory_space<vmem>>, vector<32x4xf32>
    %3 = vector.extract_strided_slice %2 {offsets = [0, 0], sizes = [32, 1], strides = [1, 1]} : vector<32x4xf32> to vector<32x1xf32>
    %4 = vector.extract_strided_slice %1 {offsets = [0, 0], sizes = [1, 512], strides = [1, 1]} : vector<4x512xf32> to vector<1x512xf32>
    %5 = vector.broadcast %3 : vector<32x1xf32> to vector<32x512xf32>
    %6 = vector.broadcast %4 : vector<1x512xf32> to vector<32x512xf32>
    %7 = arith.mulf %5, %6 : vector<32x512xf32>
    %8 = vector.extract_strided_slice %2 {offsets = [0, 1], sizes = [32, 1], strides = [1, 1]} : vector<32x4xf32> to vector<32x1xf32>
    %9 = vector.extract_strided_slice %1 {offsets = [1, 0], sizes = [1, 512], strides = [1, 1]} : vector<4x512xf32> to vector<1x512xf32>
    %10 = vector.broadcast %8 : vector<32x1xf32> to vector<32x512xf32>
    %11 = vector.broadcast %9 : vector<1x512xf32> to vector<32x512xf32>
    %12 = arith.mulf %10, %11 : vector<32x512xf32>
    %13 = arith.addf %7, %12 : vector<32x512xf32>
    %14 = vector.extract_strided_slice %2 {offsets = [0, 2], sizes = [32, 1], strides = [1, 1]} : vector<32x4xf32> to vector<32x1xf32>
    %15 = vector.extract_strided_slice %1 {offsets = [2, 0], sizes = [1, 512], strides = [1, 1]} : vector<4x512xf32> to vector<1x512xf32>
    %16 = vector.broadcast %14 : vector<32x1xf32> to vector<32x512xf32>
    %17 = vector.broadcast %15 : vector<1x512xf32> to vector<32x512xf32>
    %18 = arith.mulf %16, %17 : vector<32x512xf32>
    %19 = arith.addf %13, %18 : vector<32x512xf32>
    %20 = vector.extract_strided_slice %2 {offsets = [0, 3], sizes = [32, 1], strides = [1, 1]} : vector<32x4xf32> to vector<32x1xf32>
    %21 = vector.extract_strided_slice %1 {offsets = [3, 0], sizes = [1, 512], strides = [1, 1]} : vector<4x512xf32> to vector<1x512xf32>
    %22 = vector.broadcast %20 : vector<32x1xf32> to vector<32x512xf32>
    %23 = vector.broadcast %21 : vector<1x512xf32> to vector<32x512xf32>
    %24 = arith.mulf %22, %23 : vector<32x512xf32>
    %25 = arith.addf %19, %24 : vector<32x512xf32>
    %c0_4 = arith.constant 0 : index
    %c0_5 = arith.constant 0 : index
    %26 = vector.load %arg4[%c0_4, %c0_5] : memref<32x1xf32, #tpu.memory_space<vmem>>, vector<32x1xf32>
    %27 = vector.broadcast %26 : vector<32x1xf32> to vector<32x512xf32>
    %28 = arith.addf %25, %27 : vector<32x512xf32>
    %cst = arith.constant 0.000000e+00 : f32
    %29 = vector.broadcast %cst : f32 to vector<32x512xf32>
    %30 = arith.maximumf %28, %29 : vector<32x512xf32>
    %c0_6 = arith.constant 0 : index
    %c0_7 = arith.constant 0 : index
    %31 = vector.load %arg5[%c0_6, %c0_7] : memref<32x32xbf16, #tpu.memory_space<vmem>>, vector<32x32xbf16>
    %32 = arith.truncf %30 : vector<32x512xf32> to vector<32x512xbf16>
    %cst_8 = arith.constant dense<0.000000e+00> : vector<32x512xf32>
    %33 = tpu.matmul %31, %32, %cst_8 {dimension_numbers = #tpu.dot_dimension_numbers<[1], [0], [0], [1], [0, 0, 1, 1], [], []>} : vector<32x32xbf16>, vector<32x512xbf16>, vector<32x512xf32> -> vector<32x512xf32>
    %c0_9 = arith.constant 0 : index
    %c0_10 = arith.constant 0 : index
    %34 = vector.load %arg6[%c0_9, %c0_10] : memref<32x1xf32, #tpu.memory_space<vmem>>, vector<32x1xf32>
    %35 = vector.broadcast %34 : vector<32x1xf32> to vector<32x512xf32>
    %36 = arith.addf %33, %35 : vector<32x512xf32>
    %cst_11 = arith.constant 0.000000e+00 : f32
    %37 = vector.broadcast %cst_11 : f32 to vector<32x512xf32>
    %38 = arith.maximumf %36, %37 : vector<32x512xf32>
    %c0_12 = arith.constant 0 : index
    %c0_13 = arith.constant 0 : index
    %39 = vector.load %arg7[%c0_12, %c0_13] : memref<4x32xf32, #tpu.memory_space<vmem>>, vector<4x32xf32>
    %40 = vector.extract_strided_slice %39 {offsets = [0, 0], sizes = [4, 1], strides = [1, 1]} : vector<4x32xf32> to vector<4x1xf32>
    %41 = vector.extract_strided_slice %38 {offsets = [0, 0], sizes = [1, 512], strides = [1, 1]} : vector<32x512xf32> to vector<1x512xf32>
    %42 = vector.broadcast %40 : vector<4x1xf32> to vector<4x512xf32>
    %43 = vector.broadcast %41 : vector<1x512xf32> to vector<4x512xf32>
    %44 = arith.mulf %42, %43 : vector<4x512xf32>
    %45 = vector.extract_strided_slice %39 {offsets = [0, 1], sizes = [4, 1], strides = [1, 1]} : vector<4x32xf32> to vector<4x1xf32>
    %46 = vector.extract_strided_slice %38 {offsets = [1, 0], sizes = [1, 512], strides = [1, 1]} : vector<32x512xf32> to vector<1x512xf32>
    %47 = vector.broadcast %45 : vector<4x1xf32> to vector<4x512xf32>
    %48 = vector.broadcast %46 : vector<1x512xf32> to vector<4x512xf32>
    %49 = arith.mulf %47, %48 : vector<4x512xf32>
    %50 = arith.addf %44, %49 : vector<4x512xf32>
    %51 = vector.extract_strided_slice %39 {offsets = [0, 2], sizes = [4, 1], strides = [1, 1]} : vector<4x32xf32> to vector<4x1xf32>
    %52 = vector.extract_strided_slice %38 {offsets = [2, 0], sizes = [1, 512], strides = [1, 1]} : vector<32x512xf32> to vector<1x512xf32>
    %53 = vector.broadcast %51 : vector<4x1xf32> to vector<4x512xf32>
    %54 = vector.broadcast %52 : vector<1x512xf32> to vector<4x512xf32>
    %55 = arith.mulf %53, %54 : vector<4x512xf32>
    %56 = arith.addf %50, %55 : vector<4x512xf32>
    %57 = vector.extract_strided_slice %39 {offsets = [0, 3], sizes = [4, 1], strides = [1, 1]} : vector<4x32xf32> to vector<4x1xf32>
    %58 = vector.extract_strided_slice %38 {offsets = [3, 0], sizes = [1, 512], strides = [1, 1]} : vector<32x512xf32> to vector<1x512xf32>
    %59 = vector.broadcast %57 : vector<4x1xf32> to vector<4x512xf32>
    %60 = vector.broadcast %58 : vector<1x512xf32> to vector<4x512xf32>
    %61 = arith.mulf %59, %60 : vector<4x512xf32>
    %62 = arith.addf %56, %61 : vector<4x512xf32>
    %63 = vector.extract_strided_slice %39 {offsets = [0, 4], sizes = [4, 1], strides = [1, 1]} : vector<4x32xf32> to vector<4x1xf32>
    %64 = vector.extract_strided_slice %38 {offsets = [4, 0], sizes = [1, 512], strides = [1, 1]} : vector<32x512xf32> to vector<1x512xf32>
    %65 = vector.broadcast %63 : vector<4x1xf32> to vector<4x512xf32>
    %66 = vector.broadcast %64 : vector<1x512xf32> to vector<4x512xf32>
    %67 = arith.mulf %65, %66 : vector<4x512xf32>
    %68 = arith.addf %62, %67 : vector<4x512xf32>
    %69 = vector.extract_strided_slice %39 {offsets = [0, 5], sizes = [4, 1], strides = [1, 1]} : vector<4x32xf32> to vector<4x1xf32>
    %70 = vector.extract_strided_slice %38 {offsets = [5, 0], sizes = [1, 512], strides = [1, 1]} : vector<32x512xf32> to vector<1x512xf32>
    %71 = vector.broadcast %69 : vector<4x1xf32> to vector<4x512xf32>
    %72 = vector.broadcast %70 : vector<1x512xf32> to vector<4x512xf32>
    %73 = arith.mulf %71, %72 : vector<4x512xf32>
    %74 = arith.addf %68, %73 : vector<4x512xf32>
    %75 = vector.extract_strided_slice %39 {offsets = [0, 6], sizes = [4, 1], strides = [1, 1]} : vector<4x32xf32> to vector<4x1xf32>
    %76 = vector.extract_strided_slice %38 {offsets = [6, 0], sizes = [1, 512], strides = [1, 1]} : vector<32x512xf32> to vector<1x512xf32>
    %77 = vector.broadcast %75 : vector<4x1xf32> to vector<4x512xf32>
    %78 = vector.broadcast %76 : vector<1x512xf32> to vector<4x512xf32>
    %79 = arith.mulf %77, %78 : vector<4x512xf32>
    %80 = arith.addf %74, %79 : vector<4x512xf32>
    %81 = vector.extract_strided_slice %39 {offsets = [0, 7], sizes = [4, 1], strides = [1, 1]} : vector<4x32xf32> to vector<4x1xf32>
    %82 = vector.extract_strided_slice %38 {offsets = [7, 0], sizes = [1, 512], strides = [1, 1]} : vector<32x512xf32> to vector<1x512xf32>
    %83 = vector.broadcast %81 : vector<4x1xf32> to vector<4x512xf32>
    %84 = vector.broadcast %82 : vector<1x512xf32> to vector<4x512xf32>
    %85 = arith.mulf %83, %84 : vector<4x512xf32>
    %86 = arith.addf %80, %85 : vector<4x512xf32>
    %87 = vector.extract_strided_slice %39 {offsets = [0, 8], sizes = [4, 1], strides = [1, 1]} : vector<4x32xf32> to vector<4x1xf32>
    %88 = vector.extract_strided_slice %38 {offsets = [8, 0], sizes = [1, 512], strides = [1, 1]} : vector<32x512xf32> to vector<1x512xf32>
    %89 = vector.broadcast %87 : vector<4x1xf32> to vector<4x512xf32>
    %90 = vector.broadcast %88 : vector<1x512xf32> to vector<4x512xf32>
    %91 = arith.mulf %89, %90 : vector<4x512xf32>
    %92 = arith.addf %86, %91 : vector<4x512xf32>
    %93 = vector.extract_strided_slice %39 {offsets = [0, 9], sizes = [4, 1], strides = [1, 1]} : vector<4x32xf32> to vector<4x1xf32>
    %94 = vector.extract_strided_slice %38 {offsets = [9, 0], sizes = [1, 512], strides = [1, 1]} : vector<32x512xf32> to vector<1x512xf32>
    %95 = vector.broadcast %93 : vector<4x1xf32> to vector<4x512xf32>
    %96 = vector.broadcast %94 : vector<1x512xf32> to vector<4x512xf32>
    %97 = arith.mulf %95, %96 : vector<4x512xf32>
    %98 = arith.addf %92, %97 : vector<4x512xf32>
    %99 = vector.extract_strided_slice %39 {offsets = [0, 10], sizes = [4, 1], strides = [1, 1]} : vector<4x32xf32> to vector<4x1xf32>
    %100 = vector.extract_strided_slice %38 {offsets = [10, 0], sizes = [1, 512], strides = [1, 1]} : vector<32x512xf32> to vector<1x512xf32>
    %101 = vector.broadcast %99 : vector<4x1xf32> to vector<4x512xf32>
    %102 = vector.broadcast %100 : vector<1x512xf32> to vector<4x512xf32>
    %103 = arith.mulf %101, %102 : vector<4x512xf32>
    %104 = arith.addf %98, %103 : vector<4x512xf32>
    %105 = vector.extract_strided_slice %39 {offsets = [0, 11], sizes = [4, 1], strides = [1, 1]} : vector<4x32xf32> to vector<4x1xf32>
    %106 = vector.extract_strided_slice %38 {offsets = [11, 0], sizes = [1, 512], strides = [1, 1]} : vector<32x512xf32> to vector<1x512xf32>
    %107 = vector.broadcast %105 : vector<4x1xf32> to vector<4x512xf32>
    %108 = vector.broadcast %106 : vector<1x512xf32> to vector<4x512xf32>
    %109 = arith.mulf %107, %108 : vector<4x512xf32>
    %110 = arith.addf %104, %109 : vector<4x512xf32>
    %111 = vector.extract_strided_slice %39 {offsets = [0, 12], sizes = [4, 1], strides = [1, 1]} : vector<4x32xf32> to vector<4x1xf32>
    %112 = vector.extract_strided_slice %38 {offsets = [12, 0], sizes = [1, 512], strides = [1, 1]} : vector<32x512xf32> to vector<1x512xf32>
    %113 = vector.broadcast %111 : vector<4x1xf32> to vector<4x512xf32>
    %114 = vector.broadcast %112 : vector<1x512xf32> to vector<4x512xf32>
    %115 = arith.mulf %113, %114 : vector<4x512xf32>
    %116 = arith.addf %110, %115 : vector<4x512xf32>
    %117 = vector.extract_strided_slice %39 {offsets = [0, 13], sizes = [4, 1], strides = [1, 1]} : vector<4x32xf32> to vector<4x1xf32>
    %118 = vector.extract_strided_slice %38 {offsets = [13, 0], sizes = [1, 512], strides = [1, 1]} : vector<32x512xf32> to vector<1x512xf32>
    %119 = vector.broadcast %117 : vector<4x1xf32> to vector<4x512xf32>
    %120 = vector.broadcast %118 : vector<1x512xf32> to vector<4x512xf32>
    %121 = arith.mulf %119, %120 : vector<4x512xf32>
    %122 = arith.addf %116, %121 : vector<4x512xf32>
    %123 = vector.extract_strided_slice %39 {offsets = [0, 14], sizes = [4, 1], strides = [1, 1]} : vector<4x32xf32> to vector<4x1xf32>
    %124 = vector.extract_strided_slice %38 {offsets = [14, 0], sizes = [1, 512], strides = [1, 1]} : vector<32x512xf32> to vector<1x512xf32>
    %125 = vector.broadcast %123 : vector<4x1xf32> to vector<4x512xf32>
    %126 = vector.broadcast %124 : vector<1x512xf32> to vector<4x512xf32>
    %127 = arith.mulf %125, %126 : vector<4x512xf32>
    %128 = arith.addf %122, %127 : vector<4x512xf32>
    %129 = vector.extract_strided_slice %39 {offsets = [0, 15], sizes = [4, 1], strides = [1, 1]} : vector<4x32xf32> to vector<4x1xf32>
    %130 = vector.extract_strided_slice %38 {offsets = [15, 0], sizes = [1, 512], strides = [1, 1]} : vector<32x512xf32> to vector<1x512xf32>
    %131 = vector.broadcast %129 : vector<4x1xf32> to vector<4x512xf32>
    %132 = vector.broadcast %130 : vector<1x512xf32> to vector<4x512xf32>
    %133 = arith.mulf %131, %132 : vector<4x512xf32>
    %134 = arith.addf %128, %133 : vector<4x512xf32>
    %135 = vector.extract_strided_slice %39 {offsets = [0, 16], sizes = [4, 1], strides = [1, 1]} : vector<4x32xf32> to vector<4x1xf32>
    %136 = vector.extract_strided_slice %38 {offsets = [16, 0], sizes = [1, 512], strides = [1, 1]} : vector<32x512xf32> to vector<1x512xf32>
    %137 = vector.broadcast %135 : vector<4x1xf32> to vector<4x512xf32>
    %138 = vector.broadcast %136 : vector<1x512xf32> to vector<4x512xf32>
    %139 = arith.mulf %137, %138 : vector<4x512xf32>
    %140 = arith.addf %134, %139 : vector<4x512xf32>
    %141 = vector.extract_strided_slice %39 {offsets = [0, 17], sizes = [4, 1], strides = [1, 1]} : vector<4x32xf32> to vector<4x1xf32>
    %142 = vector.extract_strided_slice %38 {offsets = [17, 0], sizes = [1, 512], strides = [1, 1]} : vector<32x512xf32> to vector<1x512xf32>
    %143 = vector.broadcast %141 : vector<4x1xf32> to vector<4x512xf32>
    %144 = vector.broadcast %142 : vector<1x512xf32> to vector<4x512xf32>
    %145 = arith.mulf %143, %144 : vector<4x512xf32>
    %146 = arith.addf %140, %145 : vector<4x512xf32>
    %147 = vector.extract_strided_slice %39 {offsets = [0, 18], sizes = [4, 1], strides = [1, 1]} : vector<4x32xf32> to vector<4x1xf32>
    %148 = vector.extract_strided_slice %38 {offsets = [18, 0], sizes = [1, 512], strides = [1, 1]} : vector<32x512xf32> to vector<1x512xf32>
    %149 = vector.broadcast %147 : vector<4x1xf32> to vector<4x512xf32>
    %150 = vector.broadcast %148 : vector<1x512xf32> to vector<4x512xf32>
    %151 = arith.mulf %149, %150 : vector<4x512xf32>
    %152 = arith.addf %146, %151 : vector<4x512xf32>
    %153 = vector.extract_strided_slice %39 {offsets = [0, 19], sizes = [4, 1], strides = [1, 1]} : vector<4x32xf32> to vector<4x1xf32>
    %154 = vector.extract_strided_slice %38 {offsets = [19, 0], sizes = [1, 512], strides = [1, 1]} : vector<32x512xf32> to vector<1x512xf32>
    %155 = vector.broadcast %153 : vector<4x1xf32> to vector<4x512xf32>
    %156 = vector.broadcast %154 : vector<1x512xf32> to vector<4x512xf32>
    %157 = arith.mulf %155, %156 : vector<4x512xf32>
    %158 = arith.addf %152, %157 : vector<4x512xf32>
    %159 = vector.extract_strided_slice %39 {offsets = [0, 20], sizes = [4, 1], strides = [1, 1]} : vector<4x32xf32> to vector<4x1xf32>
    %160 = vector.extract_strided_slice %38 {offsets = [20, 0], sizes = [1, 512], strides = [1, 1]} : vector<32x512xf32> to vector<1x512xf32>
    %161 = vector.broadcast %159 : vector<4x1xf32> to vector<4x512xf32>
    %162 = vector.broadcast %160 : vector<1x512xf32> to vector<4x512xf32>
    %163 = arith.mulf %161, %162 : vector<4x512xf32>
    %164 = arith.addf %158, %163 : vector<4x512xf32>
    %165 = vector.extract_strided_slice %39 {offsets = [0, 21], sizes = [4, 1], strides = [1, 1]} : vector<4x32xf32> to vector<4x1xf32>
    %166 = vector.extract_strided_slice %38 {offsets = [21, 0], sizes = [1, 512], strides = [1, 1]} : vector<32x512xf32> to vector<1x512xf32>
    %167 = vector.broadcast %165 : vector<4x1xf32> to vector<4x512xf32>
    %168 = vector.broadcast %166 : vector<1x512xf32> to vector<4x512xf32>
    %169 = arith.mulf %167, %168 : vector<4x512xf32>
    %170 = arith.addf %164, %169 : vector<4x512xf32>
    %171 = vector.extract_strided_slice %39 {offsets = [0, 22], sizes = [4, 1], strides = [1, 1]} : vector<4x32xf32> to vector<4x1xf32>
    %172 = vector.extract_strided_slice %38 {offsets = [22, 0], sizes = [1, 512], strides = [1, 1]} : vector<32x512xf32> to vector<1x512xf32>
    %173 = vector.broadcast %171 : vector<4x1xf32> to vector<4x512xf32>
    %174 = vector.broadcast %172 : vector<1x512xf32> to vector<4x512xf32>
    %175 = arith.mulf %173, %174 : vector<4x512xf32>
    %176 = arith.addf %170, %175 : vector<4x512xf32>
    %177 = vector.extract_strided_slice %39 {offsets = [0, 23], sizes = [4, 1], strides = [1, 1]} : vector<4x32xf32> to vector<4x1xf32>
    %178 = vector.extract_strided_slice %38 {offsets = [23, 0], sizes = [1, 512], strides = [1, 1]} : vector<32x512xf32> to vector<1x512xf32>
    %179 = vector.broadcast %177 : vector<4x1xf32> to vector<4x512xf32>
    %180 = vector.broadcast %178 : vector<1x512xf32> to vector<4x512xf32>
    %181 = arith.mulf %179, %180 : vector<4x512xf32>
    %182 = arith.addf %176, %181 : vector<4x512xf32>
    %183 = vector.extract_strided_slice %39 {offsets = [0, 24], sizes = [4, 1], strides = [1, 1]} : vector<4x32xf32> to vector<4x1xf32>
    %184 = vector.extract_strided_slice %38 {offsets = [24, 0], sizes = [1, 512], strides = [1, 1]} : vector<32x512xf32> to vector<1x512xf32>
    %185 = vector.broadcast %183 : vector<4x1xf32> to vector<4x512xf32>
    %186 = vector.broadcast %184 : vector<1x512xf32> to vector<4x512xf32>
    %187 = arith.mulf %185, %186 : vector<4x512xf32>
    %188 = arith.addf %182, %187 : vector<4x512xf32>
    %189 = vector.extract_strided_slice %39 {offsets = [0, 25], sizes = [4, 1], strides = [1, 1]} : vector<4x32xf32> to vector<4x1xf32>
    %190 = vector.extract_strided_slice %38 {offsets = [25, 0], sizes = [1, 512], strides = [1, 1]} : vector<32x512xf32> to vector<1x512xf32>
    %191 = vector.broadcast %189 : vector<4x1xf32> to vector<4x512xf32>
    %192 = vector.broadcast %190 : vector<1x512xf32> to vector<4x512xf32>
    %193 = arith.mulf %191, %192 : vector<4x512xf32>
    %194 = arith.addf %188, %193 : vector<4x512xf32>
    %195 = vector.extract_strided_slice %39 {offsets = [0, 26], sizes = [4, 1], strides = [1, 1]} : vector<4x32xf32> to vector<4x1xf32>
    %196 = vector.extract_strided_slice %38 {offsets = [26, 0], sizes = [1, 512], strides = [1, 1]} : vector<32x512xf32> to vector<1x512xf32>
    %197 = vector.broadcast %195 : vector<4x1xf32> to vector<4x512xf32>
    %198 = vector.broadcast %196 : vector<1x512xf32> to vector<4x512xf32>
    %199 = arith.mulf %197, %198 : vector<4x512xf32>
    %200 = arith.addf %194, %199 : vector<4x512xf32>
    %201 = vector.extract_strided_slice %39 {offsets = [0, 27], sizes = [4, 1], strides = [1, 1]} : vector<4x32xf32> to vector<4x1xf32>
    %202 = vector.extract_strided_slice %38 {offsets = [27, 0], sizes = [1, 512], strides = [1, 1]} : vector<32x512xf32> to vector<1x512xf32>
    %203 = vector.broadcast %201 : vector<4x1xf32> to vector<4x512xf32>
    %204 = vector.broadcast %202 : vector<1x512xf32> to vector<4x512xf32>
    %205 = arith.mulf %203, %204 : vector<4x512xf32>
    %206 = arith.addf %200, %205 : vector<4x512xf32>
    %207 = vector.extract_strided_slice %39 {offsets = [0, 28], sizes = [4, 1], strides = [1, 1]} : vector<4x32xf32> to vector<4x1xf32>
    %208 = vector.extract_strided_slice %38 {offsets = [28, 0], sizes = [1, 512], strides = [1, 1]} : vector<32x512xf32> to vector<1x512xf32>
    %209 = vector.broadcast %207 : vector<4x1xf32> to vector<4x512xf32>
    %210 = vector.broadcast %208 : vector<1x512xf32> to vector<4x512xf32>
    %211 = arith.mulf %209, %210 : vector<4x512xf32>
    %212 = arith.addf %206, %211 : vector<4x512xf32>
    %213 = vector.extract_strided_slice %39 {offsets = [0, 29], sizes = [4, 1], strides = [1, 1]} : vector<4x32xf32> to vector<4x1xf32>
    %214 = vector.extract_strided_slice %38 {offsets = [29, 0], sizes = [1, 512], strides = [1, 1]} : vector<32x512xf32> to vector<1x512xf32>
    %215 = vector.broadcast %213 : vector<4x1xf32> to vector<4x512xf32>
    %216 = vector.broadcast %214 : vector<1x512xf32> to vector<4x512xf32>
    %217 = arith.mulf %215, %216 : vector<4x512xf32>
    %218 = arith.addf %212, %217 : vector<4x512xf32>
    %219 = vector.extract_strided_slice %39 {offsets = [0, 30], sizes = [4, 1], strides = [1, 1]} : vector<4x32xf32> to vector<4x1xf32>
    %220 = vector.extract_strided_slice %38 {offsets = [30, 0], sizes = [1, 512], strides = [1, 1]} : vector<32x512xf32> to vector<1x512xf32>
    %221 = vector.broadcast %219 : vector<4x1xf32> to vector<4x512xf32>
    %222 = vector.broadcast %220 : vector<1x512xf32> to vector<4x512xf32>
    %223 = arith.mulf %221, %222 : vector<4x512xf32>
    %224 = arith.addf %218, %223 : vector<4x512xf32>
    %225 = vector.extract_strided_slice %39 {offsets = [0, 31], sizes = [4, 1], strides = [1, 1]} : vector<4x32xf32> to vector<4x1xf32>
    %226 = vector.extract_strided_slice %38 {offsets = [31, 0], sizes = [1, 512], strides = [1, 1]} : vector<32x512xf32> to vector<1x512xf32>
    %227 = vector.broadcast %225 : vector<4x1xf32> to vector<4x512xf32>
    %228 = vector.broadcast %226 : vector<1x512xf32> to vector<4x512xf32>
    %229 = arith.mulf %227, %228 : vector<4x512xf32>
    %230 = arith.addf %224, %229 : vector<4x512xf32>
    %c0_14 = arith.constant 0 : index
    %c0_15 = arith.constant 0 : index
    %231 = vector.load %arg8[%c0_14, %c0_15] : memref<4x1xf32, #tpu.memory_space<vmem>>, vector<4x1xf32>
    %232 = vector.broadcast %231 : vector<4x1xf32> to vector<4x512xf32>
    %233 = arith.addf %230, %232 : vector<4x512xf32>
    %c0_16 = arith.constant 0 : index
    %c0_17 = arith.constant 0 : index
    %c0_18 = arith.constant 0 : index
    %234 = vector.load %arg9[%c0_16, %c0_17, %c0_18] : memref<1x4x512xf32, #tpu.memory_space<vmem>>, vector<1x4x512xf32>
    %235 = vector.shape_cast %234 : vector<1x4x512xf32> to vector<4x512xf32>
    %236 = vector.shape_cast %233 : vector<4x512xf32> to vector<1x4x512xf32>
    tpu.vector_store %arg9[%c0_16, %c0_17, %c0_18], %236 {strides = array<i32>} : memref<1x4x512xf32, #tpu.memory_space<vmem>>, vector<1x4x512xf32>,
    return
  }
  func.func @transform_0(%arg0: i32, %arg1: i32) -> (i32, i32, i32) {
    %c0_i32 = arith.constant 0 : i32
    %c0_i32_0 = arith.constant 0 : i32
    return %arg0, %c0_i32, %arg1 : i32, i32, i32
  }
  func.func @transform_1(%arg0: i32, %arg1: i32) -> (i32, i32) {
    %c0_i32 = arith.constant 0 : i32
    %c0_i32_0 = arith.constant 0 : i32
    %c0_i32_1 = arith.constant 0 : i32
    return %c0_i32, %c0_i32_0 : i32, i32
  }
  func.func @transform_2(%arg0: i32, %arg1: i32) -> (i32, i32) {
    %c0_i32 = arith.constant 0 : i32
    %c0_i32_0 = arith.constant 0 : i32
    %c0_i32_1 = arith.constant 0 : i32
    return %c0_i32, %c0_i32_0 : i32, i32
  }
  func.func @transform_3(%arg0: i32, %arg1: i32) -> (i32, i32) {
    %c0_i32 = arith.constant 0 : i32
    %c0_i32_0 = arith.constant 0 : i32
    %c0_i32_1 = arith.constant 0 : i32
    return %c0_i32, %c0_i32_0 : i32, i32
  }
  func.func @transform_4(%arg0: i32, %arg1: i32) -> (i32, i32) {
    %c0_i32 = arith.constant 0 : i32
    %c0_i32_0 = arith.constant 0 : i32
    %c0_i32_1 = arith.constant 0 : i32
    return %c0_i32, %c0_i32_0 : i32, i32
  }
  func.func @transform_5(%arg0: i32, %arg1: i32) -> (i32, i32) {
    %c0_i32 = arith.constant 0 : i32
    %c0_i32_0 = arith.constant 0 : i32
    %c0_i32_1 = arith.constant 0 : i32
    return %c0_i32, %c0_i32_0 : i32, i32
  }
  func.func @transform_6(%arg0: i32, %arg1: i32) -> (i32, i32) {
    %c0_i32 = arith.constant 0 : i32
    %c0_i32_0 = arith.constant 0 : i32
    %c0_i32_1 = arith.constant 0 : i32
    return %c0_i32, %c0_i32_0 : i32, i32
  }
  func.func @transform_7(%arg0: i32, %arg1: i32) -> (i32, i32, i32) {
    %c0_i32 = arith.constant 0 : i32
    %c0_i32_0 = arith.constant 0 : i32
    return %arg0, %c0_i32, %arg1 : i32, i32, i32
  }
}

</mosaic_0001>

<llo_original>
// kernel: tpu_custom_call.1
$region0: #{tpu_custom_call.1}
  #allocation0 [shape = 'u32[]', space=smem, size = 0x4, offset = 0x4, fixed_abs, tag = 'smem constant byte address 0x4 - core index']
  #allocation1 [shape = 'u32[72,128]{1,0:T(1,128)}', space=vmem, size = 0x9000, scoped, tag = 'internal scratch']
  %s0 = inlined_call_operand.vmem [shape: f32[2,4,512], index: 0, kind: input, shape index: {}]
  %s1 = inlined_call_operand.vmem [shape: f32[32,4], index: 1, kind: input, shape index: {}]
  %s2 = inlined_call_operand.vmem [shape: f32[32,1], index: 2, kind: input, shape index: {}]
  %s3 = inlined_call_operand.vmem [shape: bf16[32,32], index: 3, kind: input, shape index: {}]
  %s4 = inlined_call_operand.vmem [shape: f32[32,1], index: 4, kind: input, shape index: {}]
  %s5 = inlined_call_operand.vmem [shape: f32[4,32], index: 5, kind: input, shape index: {}]
  %s6 = inlined_call_operand.vmem [shape: f32[4,1], index: 6, kind: input, shape index: {}]
  %s7 = inlined_call_operand.hbm [shape: f32[2,4,512], index: 7, kind: output, shape index: {}]
  %s8 = sld [smem:[#allocation0]]
  $region61: #{tpu_custom_call.1} parent=0
    _
  %s10 = ssub.s32 1, %s8
  %s11 = scalar_select 0, %s10, %s8
  $region1: #{tpu_custom_call.1} parent=0
    #allocation2 [shape = 'u8[16384]{0}', space=vmem, size = 0x4000, scoped, tag = 'output window, operand 0']
    #allocation3 [shape = 's32[2]{0}', space=sflag, size = 0x8, scoped, tag = 'scoped memory for tpu_custom_call.1']
    %12 = vsyncpa [#allocation3], 0
    %s13 = scalar_lea.sflag [#allocation3], 1
    %14 = vsyncpa %s13, 0
    loop: start=0, step=1, limit=4
    $region2: #{tpu_custom_call.1} parent=1 // loop_pre_header
      _
    $region3: #{tpu_custom_call.1} parent=1 // loop_header
      %s16 = sphi 0, %s20
      %p17 = scmp.ge.s32.totalorder %s16, 4
      %s23 = sphi 0, %s35
      %s24 = sphi 0, %s31
      %s25 = sphi 0, %s23
      %s26 = sphi 0, %s24
      %s27 = sphi 0, %s25
      %s28 = sphi 0, %s26
      %s40 = sphi 0, %s42
      %s43 = sphi 0, %s40
      %s44 = sphi 0, %s43
      %s60 = sphi 0, %s44
      %s64 = sphi 0, %s64
      %s66 = sphi 0, %s64
      %s67 = sphi 0, %s66
      %s81 = sphi 0, %s67
      %s85 = sphi 0, %s85
      %s87 = sphi 0, %s85
      %s88 = sphi 0, %s87
      %s102 = sphi 0, %s88
      %s106 = sphi 0, %s106
      %s108 = sphi 0, %s106
      %s109 = sphi 0, %s108
      %s123 = sphi 0, %s109
      %s127 = sphi 0, %s127
      %s129 = sphi 0, %s127
      %s130 = sphi 0, %s129
      %s144 = sphi 0, %s130
      %s148 = sphi 0, %s148
      %s150 = sphi 0, %s148
      %s151 = sphi 0, %s150
      %s165 = sphi 0, %s151
      %s169 = sphi 0, %s169
      %s171 = sphi 0, %s169
      %s172 = sphi 0, %s171
      %s186 = sphi 0, %s172
      %s194 = sphi 0, %s196
      %s197 = sphi 0, %s194
      %s198 = sphi 0, %s197
      %s214 = sphi 0, %s198
    $region4: #{tpu_custom_call.1} parent=1 // loop_header_branch
      %19 = sbr.rel (%p17) target = $region8
    $region5: #{tpu_custom_call.1} parent=1 // loop_body
      %s21 = ssub.s32 %s16, 1
      %s22 = ssub.s32 %s16, 2
      %s29 = sadd.s32 1, %s24
      %p30 = scmp.ge.s32.totalorder %s29, 1
      %s31 = scalar_select %p30, 0, %s29
      %s32 = sadd.s32 1, %s23
      %s33 = scalar_select %p30, %s32, %s23
      %p34 = scmp.ge.s32.totalorder %s33, 2
      %s35 = scalar_select %p34, 0, %s33
      %s36 = ssub.s32 %s23, %s35
      %s37 = ssub.s32 %s24, %s31
      %s38 = sor.u32 %s36, %s37
      %p39 = scmp.eq.s32.totalorder %s38, 0
      %s41 = sadd.s32 %s40, 1
      %s42 = scalar_select %p39, %s40, %s41
      %p45 = pneg %p39
      %p46 = scmp.eq.s32.totalorder %s16, 1
      %p47 = por %p45, %p46
      %p48 = scmp.ne.s32.totalorder %s40, %s43
      %p49 = scmp.eq.s32.totalorder %s16, 0
      %p50 = por %p48, %p49
      %p51 = scmp.ne.s32.totalorder %s40, %s43
      %p52 = scmp.eq.s32.totalorder %s21, 1
      %p53 = por %p51, %p52
      %p54 = scmp.ne.s32.totalorder %s43, %s44
      %p55 = scmp.eq.s32.totalorder %s21, 0
      %p56 = por %p54, %p55
      %p57 = scmp.ne.s32.totalorder %s43, %s44
      %p58 = scmp.eq.s32.totalorder %s22, 1
      %p59 = por %p57, %p58
      %p61 = scmp.ne.s32.totalorder %s44, %s60
      %p62 = scmp.eq.s32.totalorder %s22, 0
      %p63 = por %p61, %p62
      %s65 = sadd.s32 %s64, 1
      %p68 = scmp.eq.s32.totalorder %s16, 1
      %p69 = scmp.ne.s32.totalorder %s64, %s66
      %p70 = scmp.eq.s32.totalorder %s16, 0
      %p71 = por %p69, %p70
      %p72 = scmp.ne.s32.totalorder %s64, %s66
      %p73 = scmp.eq.s32.totalorder %s21, 1
      %p74 = por %p72, %p73
      %p75 = scmp.ne.s32.totalorder %s66, %s67
      %p76 = scmp.eq.s32.totalorder %s21, 0
      %p77 = por %p75, %p76
      %p78 = scmp.ne.s32.totalorder %s66, %s67
      %p79 = scmp.eq.s32.totalorder %s22, 1
      %p80 = por %p78, %p79
      %p82 = scmp.ne.s32.totalorder %s67, %s81
      %p83 = scmp.eq.s32.totalorder %s22, 0
      %p84 = por %p82, %p83
      %s86 = sadd.s32 %s85, 1
      %p89 = scmp.eq.s32.totalorder %s16, 1
      %p90 = scmp.ne.s32.totalorder %s85, %s87
      %p91 = scmp.eq.s32.totalorder %s16, 0
      %p92 = por %p90, %p91
      %p93 = scmp.ne.s32.totalorder %s85, %s87
      %p94 = scmp.eq.s32.totalorder %s21, 1
      %p95 = por %p93, %p94
      %p96 = scmp.ne.s32.totalorder %s87, %s88
      %p97 = scmp.eq.s32.totalorder %s21, 0
      %p98 = por %p96, %p97
      %p99 = scmp.ne.s32.totalorder %s87, %s88
      %p100 = scmp.eq.s32.totalorder %s22, 1
      %p101 = por %p99, %p100
      %p103 = scmp.ne.s32.totalorder %s88, %s102
      %p104 = scmp.eq.s32.totalorder %s22, 0
      %p105 = por %p103, %p104
      %s107 = sadd.s32 %s106, 1
      %p110 = scmp.eq.s32.totalorder %s16, 1
      %p111 = scmp.ne.s32.totalorder %s106, %s108
      %p112 = scmp.eq.s32.totalorder %s16, 0
      %p113 = por %p111, %p112
      %p114 = scmp.ne.s32.totalorder %s106, %s108
      %p115 = scmp.eq.s32.totalorder %s21, 1
      %p116 = por %p114, %p115
      %p117 = scmp.ne.s32.totalorder %s108, %s109
      %p118 = scmp.eq.s32.totalorder %s21, 0
      %p119 = por %p117, %p118
      %p120 = scmp.ne.s32.totalorder %s108, %s109
      %p121 = scmp.eq.s32.totalorder %s22, 1
      %p122 = por %p120, %p121
      %p124 = scmp.ne.s32.totalorder %s109, %s123
      %p125 = scmp.eq.s32.totalorder %s22, 0
      %p126 = por %p124, %p125
      %s128 = sadd.s32 %s127, 1
      %p131 = scmp.eq.s32.totalorder %s16, 1
      %p132 = scmp.ne.s32.totalorder %s127, %s129
      %p133 = scmp.eq.s32.totalorder %s16, 0
      %p134 = por %p132, %p133
      %p135 = scmp.ne.s32.totalorder %s127, %s129
      %p136 = scmp.eq.s32.totalorder %s21, 1
      %p137 = por %p135, %p136
      %p138 = scmp.ne.s32.totalorder %s129, %s130
      %p139 = scmp.eq.s32.totalorder %s21, 0
      %p140 = por %p138, %p139
      %p141 = scmp.ne.s32.totalorder %s129, %s130
      %p142 = scmp.eq.s32.totalorder %s22, 1
      %p143 = por %p141, %p142
      %p145 = scmp.ne.s32.totalorder %s130, %s144
      %p146 = scmp.eq.s32.totalorder %s22, 0
      %p147 = por %p145, %p146
      %s149 = sadd.s32 %s148, 1
      %p152 = scmp.eq.s32.totalorder %s16, 1
      %p153 = scmp.ne.s32.totalorder %s148, %s150
      %p154 = scmp.eq.s32.totalorder %s16, 0
      %p155 = por %p153, %p154
      %p156 = scmp.ne.s32.totalorder %s148, %s150
      %p157 = scmp.eq.s32.totalorder %s21, 1
      %p158 = por %p156, %p157
      %p159 = scmp.ne.s32.totalorder %s150, %s151
      %p160 = scmp.eq.s32.totalorder %s21, 0
      %p161 = por %p159, %p160
      %p162 = scmp.ne.s32.totalorder %s150, %s151
      %p163 = scmp.eq.s32.totalorder %s22, 1
      %p164 = por %p162, %p163
      %p166 = scmp.ne.s32.totalorder %s151, %s165
      %p167 = scmp.eq.s32.totalorder %s22, 0
      %p168 = por %p166, %p167
      %s170 = sadd.s32 %s169, 1
      %p173 = scmp.eq.s32.totalorder %s16, 1
      %p174 = scmp.ne.s32.totalorder %s169, %s171
      %p175 = scmp.eq.s32.totalorder %s16, 0
      %p176 = por %p174, %p175
      %p177 = scmp.ne.s32.totalorder %s169, %s171
      %p178 = scmp.eq.s32.totalorder %s21, 1
      %p179 = por %p177, %p178
      %p180 = scmp.ne.s32.totalorder %s171, %s172
      %p181 = scmp.eq.s32.totalorder %s21, 0
      %p182 = por %p180, %p181
      %p183 = scmp.ne.s32.totalorder %s171, %s172
      %p184 = scmp.eq.s32.totalorder %s22, 1
      %p185 = por %p183, %p184
      %p187 = scmp.ne.s32.totalorder %s172, %s186
      %p188 = scmp.eq.s32.totalorder %s22, 0
      %p189 = por %p187, %p188
      %s190 = ssub.s32 %s23, %s35
      %s191 = ssub.s32 %s24, %s31
      %s192 = sor.u32 %s190, %s191
      %p193 = scmp.eq.s32.totalorder %s192, 0
      %s195 = sadd.s32 %s194, 1
      %s196 = scalar_select %p193, %s194, %s195
      %p199 = pneg %p193
      %p200 = scmp.eq.s32.totalorder %s16, 1
      %p201 = por %p199, %p200
      %p202 = scmp.ne.s32.totalorder %s194, %s197
      %p203 = scmp.eq.s32.totalorder %s16, 0
      %p204 = por %p202, %p203
      %p205 = scmp.ne.s32.totalorder %s194, %s197
      %p206 = scmp.eq.s32.totalorder %s21, 1
      %p207 = por %p205, %p206
      %p208 = scmp.ne.s32.totalorder %s197, %s198
      %p209 = scmp.eq.s32.totalorder %s21, 0
      %p210 = por %p208, %p209
      %p211 = scmp.ne.s32.totalorder %s197, %s198
      %p212 = scmp.eq.s32.totalorder %s22, 1
      %p213 = por %p211, %p212
      %p215 = scmp.ne.s32.totalorder %s198, %s214
      %p216 = scmp.eq.s32.totalorder %s22, 0
      %p217 = por %p215, %p216
      %p218 = scmp.le.s32.totalorder 1, %s16
      %p219 = scmp.lt.s32.totalorder %s16, 3
      %p220 = pnand %p218, %p219
      %p221 = pneg %p220
      // Predicated region
      $region9: #{tpu_custom_call.1} parent=5 // pred_check
        _
      $region10: #{tpu_custom_call.1} parent=5 // pred_check_branch
        %223 = sbr.rel (%p220) target = $region12
      $region11: #{tpu_custom_call.1} parent=5 // pred_region
        %s224 = ssub.s32 %s16, 1
        // Predicated region
        $region13: #{tpu_custom_call.1} parent=11 // pred_check
          %p225 = pneg %p77
        $region14: #{tpu_custom_call.1} parent=11 // pred_check_branch
          %227 = sbr.rel (%p225) target = $region16
        $region15: #{tpu_custom_call.1} parent=11 // pred_region
          _
        $region16: #{tpu_custom_call.1} parent=11 // pred_fallthru
          _
        // Predicated region
        $region17: #{tpu_custom_call.1} parent=11 // pred_check
          %p228 = pneg %p98
        $region18: #{tpu_custom_call.1} parent=11 // pred_check_branch
          %230 = sbr.rel (%p228) target = $region20
        $region19: #{tpu_custom_call.1} parent=11 // pred_region
          _
        $region20: #{tpu_custom_call.1} parent=11 // pred_fallthru
          _
        // Predicated region
        $region21: #{tpu_custom_call.1} parent=11 // pred_check
          %p231 = pneg %p119
        $region22: #{tpu_custom_call.1} parent=11 // pred_check_branch
          %233 = sbr.rel (%p231) target = $region24
        $region23: #{tpu_custom_call.1} parent=11 // pred_region
          _
        $region24: #{tpu_custom_call.1} parent=11 // pred_fallthru
          _
        // Predicated region
        $region25: #{tpu_custom_call.1} parent=11 // pred_check
          %p234 = pneg %p140
        $region26: #{tpu_custom_call.1} parent=11 // pred_check_branch
          %236 = sbr.rel (%p234) target = $region28
        $region27: #{tpu_custom_call.1} parent=11 // pred_region
          _
        $region28: #{tpu_custom_call.1} parent=11 // pred_fallthru
          _
        // Predicated region
        $region29: #{tpu_custom_call.1} parent=11 // pred_check
          %p237 = pneg %p161
        $region30: #{tpu_custom_call.1} parent=11 // pred_check_branch
          %239 = sbr.rel (%p237) target = $region32
        $region31: #{tpu_custom_call.1} parent=11 // pred_region
          _
        $region32: #{tpu_custom_call.1} parent=11 // pred_fallthru
          _
        // Predicated region
        $region33: #{tpu_custom_call.1} parent=11 // pred_check
          %p240 = pneg %p182
        $region34: #{tpu_custom_call.1} parent=11 // pred_check_branch
          %242 = sbr.rel (%p240) target = $region36
        $region35: #{tpu_custom_call.1} parent=11 // pred_region
          _
        $region36: #{tpu_custom_call.1} parent=11 // pred_fallthru
          _
      $region12: #{tpu_custom_call.1} parent=5 // pred_fallthru
        _
      %p243 = scmp.lt.s32.totalorder %s16, 2
      // Predicated region
      $region37: #{tpu_custom_call.1} parent=5 // pred_check
        %p244 = pneg %p243
      $region38: #{tpu_custom_call.1} parent=5 // pred_check_branch
        %246 = sbr.rel (%p244) target = $region40
      $region39: #{tpu_custom_call.1} parent=5 // pred_region
        // Predicated region
        $region41: #{tpu_custom_call.1} parent=39 // pred_check
          %p247 = pneg %p50
        $region42: #{tpu_custom_call.1} parent=39 // pred_check_branch
          %249 = sbr.rel (%p247) target = $region44
        $region43: #{tpu_custom_call.1} parent=39 // pred_region
          %s250 = smul.u32 4, %s24
          %p251 = scmp.lt.s32.totalorder %s23, 1
          %s252 = scalar_select %p251, %s23, 1
          %p253 = scmp.lt.s32.totalorder %s250, 3
          %s254 = scalar_select %p253, %s250, 3
          %s255 = smul.addr %s252, 4
          %s256 = sadd.s32 %s254, %s255
          %s257 = smul.addr %s256, 4
          %s258 = scalar_lea.vmem %s0, %s257
          %s259 = smul.u32 4, %s24
        $region44: #{tpu_custom_call.1} parent=39 // pred_fallthru
          _
      $region40: #{tpu_custom_call.1} parent=5 // pred_fallthru
        _
      %p260 = scmp.le.s32.totalorder 1, %s16
      %p261 = scmp.lt.s32.totalorder %s16, 3
      %p262 = pnand %p260, %p261
      %p263 = pneg %p262
      // Predicated region
      $region45: #{tpu_custom_call.1} parent=5 // pred_check
        _
      $region46: #{tpu_custom_call.1} parent=5 // pred_check_branch
        %265 = sbr.rel (%p262) target = $region48
      $region47: #{tpu_custom_call.1} parent=5 // pred_region
        %s266 = ssub.s32 %s16, 1
        %s267 = smul.u32 4, %s26
        %p268 = scmp.lt.s32.totalorder %s25, 1
        %s269 = scalar_select %p268, %s25, 1
        %p270 = scmp.lt.s32.totalorder %s267, 3
        %s271 = scalar_select %p270, %s267, 3
        %s272 = smul.addr %s269, 4
        %s273 = sadd.s32 %s271, %s272
        %s274 = smul.addr %s273, 4
        %s275 = scalar_lea.vmem %s0, %s274
        %p276 = pneg %p56
        %p277 = pneg %p53
        %p278 = pneg %p77
        %p279 = pneg %p74
        %p280 = pneg %p98
        %p281 = pneg %p95
        %p282 = pneg %p119
        %p283 = pneg %p116
        %p284 = pneg %p140
        %p285 = pneg %p137
        %p286 = pneg %p161
        %p287 = pneg %p158
        %p288 = pneg %p182
        %p289 = pneg %p179
        %p290 = pneg %p210
        %p291 = pneg %p207
        %s292 = sand.u32 %s197, 1
        %s293 = scalar_lea.sflag [#allocation3], %s292
        %s294 = sand.u32 %s197, 1
        %s295 = smul.addr %s294, 16
        %s296 = scalar_lea.vmem [#allocation2], %s295
        %s297 = smul.u32 4, %s26
        %p298 = scmp.lt.s32.totalorder %s25, 1
        %s299 = scalar_select %p298, %s25, 1
        %p300 = scmp.lt.s32.totalorder %s297, 3
        %s301 = scalar_select %p300, %s297, 3
        %s302 = smul.addr %s299, 4
        %s303 = sadd.s32 %s301, %s302
        %s304 = smul.addr %s303, 4
        %s305 = scalar_lea.vmem %s0, %s304
        %s306 = smul.u32 4, %s26
        %s307 = smul.u32 4, %s26
        %v309 = vld [vmem:[%s305] sm:$0xff]
        %v310 = vld [vmem:[%s305 + $0x8] sm:$0xff]
        %v311 = vld [vmem:[%s1] sm:$0xff]
        %v312 = vld [vmem:[%s1 + $0x8] sm:$0xff]
        %v313 = vld [vmem:[%s1 + $0x10] sm:$0xff]
        %v314 = vld [vmem:[%s1 + $0x18] sm:$0xff]
        %316 = vset.pattern.permute.xlu0 0
        %317 = vperm.xlu0 %316, %v311
        %v318 = vpop.permute.xlu0 %317
        %321 = vset.pattern.permute.xlu0 0
        %322 = vperm.xlu0 %321, %v312
        %v323 = vpop.permute.xlu0 %322
        %326 = vset.pattern.permute.xlu0 0
        %327 = vperm.xlu0 %326, %v313
        %v328 = vpop.permute.xlu0 %327
        %331 = vset.pattern.permute.xlu0 0
        %332 = vperm.xlu0 %331, %v314
        %v333 = vpop.permute.xlu0 %332
        %v337 = vperm.slane %v309, 0
        %v338 = vperm.slane %v309, 4
        %v339 = vperm.slane %v310, 0
        %v340 = vperm.slane %v310, 4
        %v345 = vperm.slane %v337, 0
        %v346 = vperm.slane %v338, 0
        %v347 = vperm.slane %v339, 0
        %v348 = vperm.slane %v340, 0
        %v349 = vmul.f32 %v318, %v345
        %v350 = vmul.f32 %v318, %v346
        %v351 = vmul.f32 %v318, %v347
        %v352 = vmul.f32 %v318, %v348
        %v353 = vmul.f32 %v323, %v345
        %v354 = vmul.f32 %v323, %v346
        %v355 = vmul.f32 %v323, %v347
        %v356 = vmul.f32 %v323, %v348
        %v357 = vmul.f32 %v328, %v345
        %v358 = vmul.f32 %v328, %v346
        %v359 = vmul.f32 %v328, %v347
        %v360 = vmul.f32 %v328, %v348
        %v361 = vmul.f32 %v333, %v345
        %v362 = vmul.f32 %v333, %v346
        %v363 = vmul.f32 %v333, %v347
        %v364 = vmul.f32 %v333, %v348
        %365 = vset.pattern.permute.xlu0 1
        %366 = vperm.xlu0 %365, %v311
        %v367 = vpop.permute.xlu0 %366
        %369 = vset.pattern.permute.xlu0 1
        %370 = vperm.xlu0 %369, %v312
        %v371 = vpop.permute.xlu0 %370
        %373 = vset.pattern.permute.xlu0 1
        %374 = vperm.xlu0 %373, %v313
        %v375 = vpop.permute.xlu0 %374
        %377 = vset.pattern.permute.xlu0 1
        %378 = vperm.xlu0 %377, %v314
        %v379 = vpop.permute.xlu0 %378
        %v381 = vperm.slane %v309, 1
        %v382 = vperm.slane %v309, 5
        %v383 = vperm.slane %v310, 1
        %v384 = vperm.slane %v310, 5
        %v389 = vperm.slane %v381, 1
        %v390 = vperm.slane %v382, 1
        %v391 = vperm.slane %v383, 1
        %v392 = vperm.slane %v384, 1
        %v393 = vmul.f32 %v367, %v389
        %v394 = vmul.f32 %v367, %v390
        %v395 = vmul.f32 %v367, %v391
        %v396 = vmul.f32 %v367, %v392
        %v397 = vmul.f32 %v371, %v389
        %v398 = vmul.f32 %v371, %v390
        %v399 = vmul.f32 %v371, %v391
        %v400 = vmul.f32 %v371, %v392
        %v401 = vmul.f32 %v375, %v389
        %v402 = vmul.f32 %v375, %v390
        %v403 = vmul.f32 %v375, %v391
        %v404 = vmul.f32 %v375, %v392
        %v405 = vmul.f32 %v379, %v389
        %v406 = vmul.f32 %v379, %v390
        %v407 = vmul.f32 %v379, %v391
        %v408 = vmul.f32 %v379, %v392
        %v409 = vadd.f32 %v349, %v393
        %v410 = vadd.f32 %v350, %v394
        %v411 = vadd.f32 %v351, %v395
        %v412 = vadd.f32 %v352, %v396
        %v413 = vadd.f32 %v353, %v397
        %v414 = vadd.f32 %v354, %v398
        %v415 = vadd.f32 %v355, %v399
        %v416 = vadd.f32 %v356, %v400
        %v417 = vadd.f32 %v357, %v401
        %v418 = vadd.f32 %v358, %v402
        %v419 = vadd.f32 %v359, %v403
        %v420 = vadd.f32 %v360, %v404
        %v421 = vadd.f32 %v361, %v405
        %v422 = vadd.f32 %v362, %v406
        %v423 = vadd.f32 %v363, %v407
        %v424 = vadd.f32 %v364, %v408
        %425 = vset.pattern.permute.xlu0 2
        %426 = vperm.xlu0 %425, %v311
        %v427 = vpop.permute.xlu0 %426
        %429 = vset.pattern.permute.xlu0 2
        %430 = vperm.xlu0 %429, %v312
        %v431 = vpop.permute.xlu0 %430
        %433 = vset.pattern.permute.xlu0 2
        %434 = vperm.xlu0 %433, %v313
        %v435 = vpop.permute.xlu0 %434
        %437 = vset.pattern.permute.xlu0 2
        %438 = vperm.xlu0 %437, %v314
        %v439 = vpop.permute.xlu0 %438
        %v441 = vperm.slane %v309, 2
        %v442 = vperm.slane %v309, 6
        %v443 = vperm.slane %v310, 2
        %v444 = vperm.slane %v310, 6
        %v449 = vperm.slane %v441, 2
        %v450 = vperm.slane %v442, 2
        %v451 = vperm.slane %v443, 2
        %v452 = vperm.slane %v444, 2
        %v453 = vmul.f32 %v427, %v449
        %v454 = vmul.f32 %v427, %v450
        %v455 = vmul.f32 %v427, %v451
        %v456 = vmul.f32 %v427, %v452
        %v457 = vmul.f32 %v431, %v449
        %v458 = vmul.f32 %v431, %v450
        %v459 = vmul.f32 %v431, %v451
        %v460 = vmul.f32 %v431, %v452
        %v461 = vmul.f32 %v435, %v449
        %v462 = vmul.f32 %v435, %v450
        %v463 = vmul.f32 %v435, %v451
        %v464 = vmul.f32 %v435, %v452
        %v465 = vmul.f32 %v439, %v449
        %v466 = vmul.f32 %v439, %v450
        %v467 = vmul.f32 %v439, %v451
        %v468 = vmul.f32 %v439, %v452
        %v469 = vadd.f32 %v409, %v453
        %v470 = vadd.f32 %v410, %v454
        %v471 = vadd.f32 %v411, %v455
        %v472 = vadd.f32 %v412, %v456
        %v473 = vadd.f32 %v413, %v457
        %v474 = vadd.f32 %v414, %v458
        %v475 = vadd.f32 %v415, %v459
        %v476 = vadd.f32 %v416, %v460
        %v477 = vadd.f32 %v417, %v461
        %v478 = vadd.f32 %v418, %v462
        %v479 = vadd.f32 %v419, %v463
        %v480 = vadd.f32 %v420, %v464
        %v481 = vadd.f32 %v421, %v465
        %v482 = vadd.f32 %v422, %v466
        %v483 = vadd.f32 %v423, %v467
        %v484 = vadd.f32 %v424, %v468
        %485 = vset.pattern.permute.xlu0 3
        %486 = vperm.xlu0 %485, %v311
        %v487 = vpop.permute.xlu0 %486
        %489 = vset.pattern.permute.xlu0 3
        %490 = vperm.xlu0 %489, %v312
        %v491 = vpop.permute.xlu0 %490
        %493 = vset.pattern.permute.xlu0 3
        %494 = vperm.xlu0 %493, %v313
        %v495 = vpop.permute.xlu0 %494
        %497 = vset.pattern.permute.xlu0 3
        %498 = vperm.xlu0 %497, %v314
        %v499 = vpop.permute.xlu0 %498
        %v501 = vperm.slane %v309, 3
        %v502 = vperm.slane %v309, 7
        %v503 = vperm.slane %v310, 3
        %v504 = vperm.slane %v310, 7
        %v509 = vperm.slane %v501, 3
        %v510 = vperm.slane %v502, 3
        %v511 = vperm.slane %v503, 3
        %v512 = vperm.slane %v504, 3
        %v513 = vmul.f32 %v487, %v509
        %v514 = vmul.f32 %v487, %v510
        %v515 = vmul.f32 %v487, %v511
        %v516 = vmul.f32 %v487, %v512
        %v517 = vmul.f32 %v491, %v509
        %v518 = vmul.f32 %v491, %v510
        %v519 = vmul.f32 %v491, %v511
        %v520 = vmul.f32 %v491, %v512
        %v521 = vmul.f32 %v495, %v509
        %v522 = vmul.f32 %v495, %v510
        %v523 = vmul.f32 %v495, %v511
        %v524 = vmul.f32 %v495, %v512
        %v525 = vmul.f32 %v499, %v509
        %v526 = vmul.f32 %v499, %v510
        %v527 = vmul.f32 %v499, %v511
        %v528 = vmul.f32 %v499, %v512
        %v529 = vadd.f32 %v469, %v513
        %v530 = vadd.f32 %v470, %v514
        %v531 = vadd.f32 %v471, %v515
        %v532 = vadd.f32 %v472, %v516
        %v533 = vadd.f32 %v473, %v517
        %v534 = vadd.f32 %v474, %v518
        %v535 = vadd.f32 %v475, %v519
        %v536 = vadd.f32 %v476, %v520
        %v537 = vadd.f32 %v477, %v521
        %v538 = vadd.f32 %v478, %v522
        %v539 = vadd.f32 %v479, %v523
        %v540 = vadd.f32 %v480, %v524
        %v541 = vadd.f32 %v481, %v525
        %v542 = vadd.f32 %v482, %v526
        %v543 = vadd.f32 %v483, %v527
        %v544 = vadd.f32 %v484, %v528
        %v545 = vld [vmem:[%s2] sm:$0xff]
        %v546 = vld [vmem:[%s2 + $0x8] sm:$0xff]
        %v547 = vld [vmem:[%s2 + $0x10] sm:$0xff]
        %v548 = vld [vmem:[%s2 + $0x18] sm:$0xff]
        %550 = vset.pattern.permute.xlu0 0
        %551 = vperm.xlu0 %550, %v545
        %v552 = vpop.permute.xlu0 %551
        %555 = vset.pattern.permute.xlu0 0
        %556 = vperm.xlu0 %555, %v546
        %v557 = vpop.permute.xlu0 %556
        %560 = vset.pattern.permute.xlu0 0
        %561 = vperm.xlu0 %560, %v547
        %v562 = vpop.permute.xlu0 %561
        %565 = vset.pattern.permute.xlu0 0
        %566 = vperm.xlu0 %565, %v548
        %v567 = vpop.permute.xlu0 %566
        %v569 = vadd.f32 %v529, %v552
        %v570 = vadd.f32 %v530, %v552
        %v571 = vadd.f32 %v531, %v552
        %v572 = vadd.f32 %v532, %v552
        %v573 = vadd.f32 %v533, %v557
        %v574 = vadd.f32 %v534, %v557
        %v575 = vadd.f32 %v535, %v557
        %v576 = vadd.f32 %v536, %v557
        %v577 = vadd.f32 %v537, %v562
        %v578 = vadd.f32 %v538, %v562
        %v579 = vadd.f32 %v539, %v562
        %v580 = vadd.f32 %v540, %v562
        %v581 = vadd.f32 %v541, %v567
        %v582 = vadd.f32 %v542, %v567
        %v583 = vadd.f32 %v543, %v567
        %v584 = vadd.f32 %v544, %v567
        %v585 = vmax.f32 %v569, 0.0
        %v586 = vmax.f32 %v570, 0.0
        %v587 = vmax.f32 %v571, 0.0
        %v588 = vmax.f32 %v572, 0.0
        %v589 = vmax.f32 %v573, 0.0
        %v590 = vmax.f32 %v574, 0.0
        %v591 = vmax.f32 %v575, 0.0
        %v592 = vmax.f32 %v576, 0.0
        %v593 = vmax.f32 %v577, 0.0
        %v594 = vmax.f32 %v578, 0.0
        %v595 = vmax.f32 %v579, 0.0
        %v596 = vmax.f32 %v580, 0.0
        %v597 = vmax.f32 %v581, 0.0
        %v598 = vmax.f32 %v582, 0.0
        %v599 = vmax.f32 %v583, 0.0
        %v600 = vmax.f32 %v584, 0.0
        %v601 = vld [vmem:[%s3] sm:$0xf]
        %v602 = vld [vmem:[%s3 + $0x4] sm:$0xf]
        %v603 = vld [vmem:[%s3 + $0x8] sm:$0xf]
        %v604 = vld [vmem:[%s3 + $0xc] sm:$0xf]
        %v605 = vpack.c.bf16 %v589, %v585
        %v606 = vpack.c.bf16 %v590, %v586
        %v607 = vpack.c.bf16 %v591, %v587
        %v608 = vpack.c.bf16 %v592, %v588
        %v609 = vpack.c.bf16 %v597, %v593
        %v610 = vpack.c.bf16 %v598, %v594
        %v611 = vpack.c.bf16 %v599, %v595
        %v612 = vpack.c.bf16 %v600, %v596
        %v613 = vld [vmem:[%s4] sm:$0xff]
        %v614 = vld [vmem:[%s4 + $0x8] sm:$0xff]
        %v615 = vld [vmem:[%s4 + $0x10] sm:$0xff]
        %v616 = vld [vmem:[%s4 + $0x18] sm:$0xff]
        %618 = vset.pattern.permute.xlu0 0
        %619 = vperm.xlu0 %618, %v613
        %v620 = vpop.permute.xlu0 %619
        %623 = vset.pattern.permute.xlu0 0
        %624 = vperm.xlu0 %623, %v614
        %v625 = vpop.permute.xlu0 %624
        %628 = vset.pattern.permute.xlu0 0
        %629 = vperm.xlu0 %628, %v615
        %v630 = vpop.permute.xlu0 %629
        %633 = vset.pattern.permute.xlu0 0
        %634 = vperm.xlu0 %633, %v616
        %v635 = vpop.permute.xlu0 %634
        %v641 = vunpack.c.l.b16 %v601
        %v642 = vunpack.c.l.b16 %v602
        %v643 = vunpack.c.l.b16 %v603
        %v644 = vunpack.c.l.b16 %v604
        %v645 = vpack.c.b16 %v642, %v641
        %v646 = vpack.c.b16 %v644, %v643
        %vm647 = vcmask 261120
        %v649 = vsel %vm647, %v645, 0
        %v652 = vsel %vm647, %v646, 0
        %654 = vmatpush.bf16.msra.mxu0 0
        %655 = vmatpush.bf16.msra.mxu0 0
        %656 = vmatpush.bf16.msra.mxu0 0
        %657 = vmatpush.bf16.msra.mxu0 0
        %658 = vmatpush.bf16.msra.mxu0 0
        %659 = vmatpush.bf16.msra.mxu0 0
        %660 = vmatpush.bf16.msra.mxu0 %v609
        %661 = vmatpush.bf16.msra.mxu0 %v605
        %662 = vmatmul.bf16.gmra.mxu0 %v649
        %v663 = vpop.f32.mrf.mxu0
        %v664 = vadd.f32 %v620, %v663
        %v665 = vpop.f32.mrf.mxu0
        %v666 = vadd.f32 %v625, %v665
        %667 = vmatmul.bf16.gmra.mxu0 %v652
        %v668 = vpop.f32.mrf.mxu0
        %v669 = vadd.f32 %v630, %v668
        %v670 = vpop.f32.mrf.mxu0
        %v671 = vadd.f32 %v635, %v670
        %672 = vdwg.mxu0
        %673 = vmatpush.bf16.msra.mxu0 0
        %674 = vmatpush.bf16.msra.mxu0 0
        %675 = vmatpush.bf16.msra.mxu0 0
        %676 = vmatpush.bf16.msra.mxu0 0
        %677 = vmatpush.bf16.msra.mxu0 0
        %678 = vmatpush.bf16.msra.mxu0 0
        %679 = vmatpush.bf16.msra.mxu0 %v610
        %680 = vmatpush.bf16.msra.mxu0 %v606
        %681 = vmatmul.bf16.gmra.mxu0 %v649
        %v682 = vpop.f32.mrf.mxu0
        %v683 = vadd.f32 %v620, %v682
        %v684 = vpop.f32.mrf.mxu0
        %v685 = vadd.f32 %v625, %v684
        %686 = vmatmul.bf16.gmra.mxu0 %v652
        %v687 = vpop.f32.mrf.mxu0
        %v688 = vadd.f32 %v630, %v687
        %v689 = vpop.f32.mrf.mxu0
        %v690 = vadd.f32 %v635, %v689
        %691 = vdwg.mxu0
        %692 = vmatpush.bf16.msra.mxu0 0
        %693 = vmatpush.bf16.msra.mxu0 0
        %694 = vmatpush.bf16.msra.mxu0 0
        %695 = vmatpush.bf16.msra.mxu0 0
        %696 = vmatpush.bf16.msra.mxu0 0
        %697 = vmatpush.bf16.msra.mxu0 0
        %698 = vmatpush.bf16.msra.mxu0 %v611
        %699 = vmatpush.bf16.msra.mxu0 %v607
        %700 = vmatmul.bf16.gmra.mxu0 %v649
        %v701 = vpop.f32.mrf.mxu0
        %v702 = vadd.f32 %v620, %v701
        %v703 = vpop.f32.mrf.mxu0
        %v704 = vadd.f32 %v625, %v703
        %705 = vmatmul.bf16.gmra.mxu0 %v652
        %v706 = vpop.f32.mrf.mxu0
        %v707 = vadd.f32 %v630, %v706
        %v708 = vpop.f32.mrf.mxu0
        %v709 = vadd.f32 %v635, %v708
        %710 = vdwg.mxu0
        %711 = vmatpush.bf16.msra.mxu0 0
        %712 = vmatpush.bf16.msra.mxu0 0
        %713 = vmatpush.bf16.msra.mxu0 0
        %714 = vmatpush.bf16.msra.mxu0 0
        %715 = vmatpush.bf16.msra.mxu0 0
        %716 = vmatpush.bf16.msra.mxu0 0
        %717 = vmatpush.bf16.msra.mxu0 %v612
        %718 = vmatpush.bf16.msra.mxu0 %v608
        %719 = vmatmul.bf16.gmra.mxu0 %v649
        %v720 = vpop.f32.mrf.mxu0
        %v721 = vadd.f32 %v620, %v720
        %v722 = vpop.f32.mrf.mxu0
        %v723 = vadd.f32 %v625, %v722
        %724 = vmatmul.bf16.gmra.mxu0 %v652
        %v725 = vpop.f32.mrf.mxu0
        %v726 = vadd.f32 %v630, %v725
        %v727 = vpop.f32.mrf.mxu0
        %v728 = vadd.f32 %v635, %v727
        %729 = vdwg.mxu0
        %v730 = vmax.f32 %v664, 0.0
        %v731 = vmax.f32 %v683, 0.0
        %v732 = vmax.f32 %v702, 0.0
        %v733 = vmax.f32 %v721, 0.0
        %v734 = vmax.f32 %v666, 0.0
        %v735 = vmax.f32 %v685, 0.0
        %v736 = vmax.f32 %v704, 0.0
        %v737 = vmax.f32 %v723, 0.0
        %v738 = vmax.f32 %v669, 0.0
        %v739 = vmax.f32 %v688, 0.0
        %v740 = vmax.f32 %v707, 0.0
        %v741 = vmax.f32 %v726, 0.0
        %v742 = vmax.f32 %v671, 0.0
        %v743 = vmax.f32 %v690, 0.0
        %v744 = vmax.f32 %v709, 0.0
        %v745 = vmax.f32 %v728, 0.0
        %v746 = vld [vmem:[%s5] sm:$0xf]
        %748 = vset.pattern.permute.xlu0 0
        %749 = vperm.xlu0 %748, %v746
        %v750 = vpop.permute.xlu0 %749
        %v752 = vperm.slane %v730, 0
        %v753 = vperm.slane %v731, 0
        %v754 = vperm.slane %v732, 0
        %v755 = vperm.slane %v733, 0
        %v756 = vmul.f32 %v750, %v752
        %v757 = vmul.f32 %v750, %v753
        %v758 = vmul.f32 %v750, %v754
        %v759 = vmul.f32 %v750, %v755
        %760 = vset.pattern.permute.xlu0 1
        %761 = vperm.xlu0 %760, %v746
        %v762 = vpop.permute.xlu0 %761
        %v764 = vperm.slane %v730, 1
        %v765 = vperm.slane %v731, 1
        %v766 = vperm.slane %v732, 1
        %v767 = vperm.slane %v733, 1
        %v768 = vmul.f32 %v762, %v764
        %v769 = vmul.f32 %v762, %v765
        %v770 = vmul.f32 %v762, %v766
        %v771 = vmul.f32 %v762, %v767
        %v772 = vadd.f32 %v756, %v768
        %v773 = vadd.f32 %v757, %v769
        %v774 = vadd.f32 %v758, %v770
        %v775 = vadd.f32 %v759, %v771
        %776 = vset.pattern.permute.xlu0 2
        %777 = vperm.xlu0 %776, %v746
        %v778 = vpop.permute.xlu0 %777
        %v780 = vperm.slane %v730, 2
        %v781 = vperm.slane %v731, 2
        %v782 = vperm.slane %v732, 2
        %v783 = vperm.slane %v733, 2
        %v784 = vmul.f32 %v778, %v780
        %v785 = vmul.f32 %v778, %v781
        %v786 = vmul.f32 %v778, %v782
        %v787 = vmul.f32 %v778, %v783
        %v788 = vadd.f32 %v772, %v784
        %v789 = vadd.f32 %v773, %v785
        %v790 = vadd.f32 %v774, %v786
        %v791 = vadd.f32 %v775, %v787
        %792 = vset.pattern.permute.xlu0 3
        %793 = vperm.xlu0 %792, %v746
        %v794 = vpop.permute.xlu0 %793
        %v796 = vperm.slane %v730, 3
        %v797 = vperm.slane %v731, 3
        %v798 = vperm.slane %v732, 3
        %v799 = vperm.slane %v733, 3
        %v800 = vmul.f32 %v794, %v796
        %v801 = vmul.f32 %v794, %v797
        %v802 = vmul.f32 %v794, %v798
        %v803 = vmul.f32 %v794, %v799
        %v804 = vadd.f32 %v788, %v800
        %v805 = vadd.f32 %v789, %v801
        %v806 = vadd.f32 %v790, %v802
        %v807 = vadd.f32 %v791, %v803
        %808 = vset.pattern.permute.xlu0 4
        %809 = vperm.xlu0 %808, %v746
        %v810 = vpop.permute.xlu0 %809
        %v812 = vperm.slane %v730, 4
        %v813 = vperm.slane %v731, 4
        %v814 = vperm.slane %v732, 4
        %v815 = vperm.slane %v733, 4
        %v816 = vmul.f32 %v810, %v812
        %v817 = vmul.f32 %v810, %v813
        %v818 = vmul.f32 %v810, %v814
        %v819 = vmul.f32 %v810, %v815
        %v820 = vadd.f32 %v804, %v816
        %v821 = vadd.f32 %v805, %v817
        %v822 = vadd.f32 %v806, %v818
        %v823 = vadd.f32 %v807, %v819
        %824 = vset.pattern.permute.xlu0 5
        %825 = vperm.xlu0 %824, %v746
        %v826 = vpop.permute.xlu0 %825
        %v828 = vperm.slane %v730, 5
        %v829 = vperm.slane %v731, 5
        %v830 = vperm.slane %v732, 5
        %v831 = vperm.slane %v733, 5
        %v832 = vmul.f32 %v826, %v828
        %v833 = vmul.f32 %v826, %v829
        %v834 = vmul.f32 %v826, %v830
        %v835 = vmul.f32 %v826, %v831
        %v836 = vadd.f32 %v820, %v832
        %v837 = vadd.f32 %v821, %v833
        %v838 = vadd.f32 %v822, %v834
        %v839 = vadd.f32 %v823, %v835
        %840 = vset.pattern.permute.xlu0 6
        %841 = vperm.xlu0 %840, %v746
        %v842 = vpop.permute.xlu0 %841
        %v844 = vperm.slane %v730, 6
        %v845 = vperm.slane %v731, 6
        %v846 = vperm.slane %v732, 6
        %v847 = vperm.slane %v733, 6
        %v848 = vmul.f32 %v842, %v844
        %v849 = vmul.f32 %v842, %v845
        %v850 = vmul.f32 %v842, %v846
        %v851 = vmul.f32 %v842, %v847
        %v852 = vadd.f32 %v836, %v848
        %v853 = vadd.f32 %v837, %v849
        %v854 = vadd.f32 %v838, %v850
        %v855 = vadd.f32 %v839, %v851
        %856 = vset.pattern.permute.xlu0 7
        %857 = vperm.xlu0 %856, %v746
        %v858 = vpop.permute.xlu0 %857
        %v860 = vperm.slane %v730, 7
        %v861 = vperm.slane %v731, 7
        %v862 = vperm.slane %v732, 7
        %v863 = vperm.slane %v733, 7
        %v864 = vmul.f32 %v858, %v860
        %v865 = vmul.f32 %v858, %v861
        %v866 = vmul.f32 %v858, %v862
        %v867 = vmul.f32 %v858, %v863
        %v868 = vadd.f32 %v852, %v864
        %v869 = vadd.f32 %v853, %v865
        %v870 = vadd.f32 %v854, %v866
        %v871 = vadd.f32 %v855, %v867
        %872 = vset.pattern.permute.xlu0 8
        %873 = vperm.xlu0 %872, %v746
        %v874 = vpop.permute.xlu0 %873
        %v876 = vperm.slane %v734, 0
        %v877 = vperm.slane %v735, 0
        %v878 = vperm.slane %v736, 0
        %v879 = vperm.slane %v737, 0
        %v880 = vmul.f32 %v874, %v876
        %v881 = vmul.f32 %v874, %v877
        %v882 = vmul.f32 %v874, %v878
        %v883 = vmul.f32 %v874, %v879
        %v884 = vadd.f32 %v868, %v880
        %v885 = vadd.f32 %v869, %v881
        %v886 = vadd.f32 %v870, %v882
        %v887 = vadd.f32 %v871, %v883
        %888 = vset.pattern.permute.xlu0 9
        %889 = vperm.xlu0 %888, %v746
        %v890 = vpop.permute.xlu0 %889
        %v892 = vperm.slane %v734, 1
        %v893 = vperm.slane %v735, 1
        %v894 = vperm.slane %v736, 1
        %v895 = vperm.slane %v737, 1
        %v896 = vmul.f32 %v890, %v892
        %v897 = vmul.f32 %v890, %v893
        %v898 = vmul.f32 %v890, %v894
        %v899 = vmul.f32 %v890, %v895
        %v900 = vadd.f32 %v884, %v896
        %v901 = vadd.f32 %v885, %v897
        %v902 = vadd.f32 %v886, %v898
        %v903 = vadd.f32 %v887, %v899
        %904 = vset.pattern.permute.xlu0 10
        %905 = vperm.xlu0 %904, %v746
        %v906 = vpop.permute.xlu0 %905
        %v908 = vperm.slane %v734, 2
        %v909 = vperm.slane %v735, 2
        %v910 = vperm.slane %v736, 2
        %v911 = vperm.slane %v737, 2
        %v912 = vmul.f32 %v906, %v908
        %v913 = vmul.f32 %v906, %v909
        %v914 = vmul.f32 %v906, %v910
        %v915 = vmul.f32 %v906, %v911
        %v916 = vadd.f32 %v900, %v912
        %v917 = vadd.f32 %v901, %v913
        %v918 = vadd.f32 %v902, %v914
        %v919 = vadd.f32 %v903, %v915
        %920 = vset.pattern.permute.xlu0 11
        %921 = vperm.xlu0 %920, %v746
        %v922 = vpop.permute.xlu0 %921
        %v924 = vperm.slane %v734, 3
        %v925 = vperm.slane %v735, 3
        %v926 = vperm.slane %v736, 3
        %v927 = vperm.slane %v737, 3
        %v928 = vmul.f32 %v922, %v924
        %v929 = vmul.f32 %v922, %v925
        %v930 = vmul.f32 %v922, %v926
        %v931 = vmul.f32 %v922, %v927
        %v932 = vadd.f32 %v916, %v928
        %v933 = vadd.f32 %v917, %v929
        %v934 = vadd.f32 %v918, %v930
        %v935 = vadd.f32 %v919, %v931
        %936 = vset.pattern.permute.xlu0 12
        %937 = vperm.xlu0 %936, %v746
        %v938 = vpop.permute.xlu0 %937
        %v940 = vperm.slane %v734, 4
        %v941 = vperm.slane %v735, 4
        %v942 = vperm.slane %v736, 4
        %v943 = vperm.slane %v737, 4
        %v944 = vmul.f32 %v938, %v940
        %v945 = vmul.f32 %v938, %v941
        %v946 = vmul.f32 %v938, %v942
        %v947 = vmul.f32 %v938, %v943
        %v948 = vadd.f32 %v932, %v944
        %v949 = vadd.f32 %v933, %v945
        %v950 = vadd.f32 %v934, %v946
        %v951 = vadd.f32 %v935, %v947
        %952 = vset.pattern.permute.xlu0 13
        %953 = vperm.xlu0 %952, %v746
        %v954 = vpop.permute.xlu0 %953
        %v956 = vperm.slane %v734, 5
        %v957 = vperm.slane %v735, 5
        %v958 = vperm.slane %v736, 5
        %v959 = vperm.slane %v737, 5
        %v960 = vmul.f32 %v954, %v956
        %v961 = vmul.f32 %v954, %v957
        %v962 = vmul.f32 %v954, %v958
        %v963 = vmul.f32 %v954, %v959
        %v964 = vadd.f32 %v948, %v960
        %v965 = vadd.f32 %v949, %v961
        %v966 = vadd.f32 %v950, %v962
        %v967 = vadd.f32 %v951, %v963
        %968 = vset.pattern.permute.xlu0 14
        %969 = vperm.xlu0 %968, %v746
        %v970 = vpop.permute.xlu0 %969
        %v972 = vperm.slane %v734, 6
        %v973 = vperm.slane %v735, 6
        %v974 = vperm.slane %v736, 6
        %v975 = vperm.slane %v737, 6
        %v976 = vmul.f32 %v970, %v972
        %v977 = vmul.f32 %v970, %v973
        %v978 = vmul.f32 %v970, %v974
        %v979 = vmul.f32 %v970, %v975
        %v980 = vadd.f32 %v964, %v976
        %v981 = vadd.f32 %v965, %v977
        %v982 = vadd.f32 %v966, %v978
        %v983 = vadd.f32 %v967, %v979
        %984 = vset.pattern.permute.xlu0 15
        %985 = vperm.xlu0 %984, %v746
        %v986 = vpop.permute.xlu0 %985
        %v988 = vperm.slane %v734, 7
        %v989 = vperm.slane %v735, 7
        %v990 = vperm.slane %v736, 7
        %v991 = vperm.slane %v737, 7
        %v992 = vmul.f32 %v986, %v988
        %v993 = vmul.f32 %v986, %v989
        %v994 = vmul.f32 %v986, %v990
        %v995 = vmul.f32 %v986, %v991
        %v996 = vadd.f32 %v980, %v992
        %v997 = vadd.f32 %v981, %v993
        %v998 = vadd.f32 %v982, %v994
        %v999 = vadd.f32 %v983, %v995
        %1000 = vset.pattern.permute.xlu0 16
        %1001 = vperm.xlu0 %1000, %v746
        %v1002 = vpop.permute.xlu0 %1001
        %v1004 = vperm.slane %v738, 0
        %v1005 = vperm.slane %v739, 0
        %v1006 = vperm.slane %v740, 0
        %v1007 = vperm.slane %v741, 0
        %v1008 = vmul.f32 %v1002, %v1004
        %v1009 = vmul.f32 %v1002, %v1005
        %v1010 = vmul.f32 %v1002, %v1006
        %v1011 = vmul.f32 %v1002, %v1007
        %v1012 = vadd.f32 %v996, %v1008
        %v1013 = vadd.f32 %v997, %v1009
        %v1014 = vadd.f32 %v998, %v1010
        %v1015 = vadd.f32 %v999, %v1011
        %1016 = vset.pattern.permute.xlu0 17
        %1017 = vperm.xlu0 %1016, %v746
        %v1018 = vpop.permute.xlu0 %1017
        %v1020 = vperm.slane %v738, 1
        %v1021 = vperm.slane %v739, 1
        %v1022 = vperm.slane %v740, 1
        %v1023 = vperm.slane %v741, 1
        %v1024 = vmul.f32 %v1018, %v1020
        %v1025 = vmul.f32 %v1018, %v1021
        %v1026 = vmul.f32 %v1018, %v1022
        %v1027 = vmul.f32 %v1018, %v1023
        %v1028 = vadd.f32 %v1012, %v1024
        %v1029 = vadd.f32 %v1013, %v1025
        %v1030 = vadd.f32 %v1014, %v1026
        %v1031 = vadd.f32 %v1015, %v1027
        %1032 = vset.pattern.permute.xlu0 18
        %1033 = vperm.xlu0 %1032, %v746
        %v1034 = vpop.permute.xlu0 %1033
        %v1036 = vperm.slane %v738, 2
        %v1037 = vperm.slane %v739, 2
        %v1038 = vperm.slane %v740, 2
        %v1039 = vperm.slane %v741, 2
        %v1040 = vmul.f32 %v1034, %v1036
        %v1041 = vmul.f32 %v1034, %v1037
        %v1042 = vmul.f32 %v1034, %v1038
        %v1043 = vmul.f32 %v1034, %v1039
        %v1044 = vadd.f32 %v1028, %v1040
        %v1045 = vadd.f32 %v1029, %v1041
        %v1046 = vadd.f32 %v1030, %v1042
        %v1047 = vadd.f32 %v1031, %v1043
        %1048 = vset.pattern.permute.xlu0 19
        %1049 = vperm.xlu0 %1048, %v746
        %v1050 = vpop.permute.xlu0 %1049
        %v1052 = vperm.slane %v738, 3
        %v1053 = vperm.slane %v739, 3
        %v1054 = vperm.slane %v740, 3
        %v1055 = vperm.slane %v741, 3
        %v1056 = vmul.f32 %v1050, %v1052
        %v1057 = vmul.f32 %v1050, %v1053
        %v1058 = vmul.f32 %v1050, %v1054
        %v1059 = vmul.f32 %v1050, %v1055
        %v1060 = vadd.f32 %v1044, %v1056
        %v1061 = vadd.f32 %v1045, %v1057
        %v1062 = vadd.f32 %v1046, %v1058
        %v1063 = vadd.f32 %v1047, %v1059
        %1064 = vset.pattern.permute.xlu0 20
        %1065 = vperm.xlu0 %1064, %v746
        %v1066 = vpop.permute.xlu0 %1065
        %v1068 = vperm.slane %v738, 4
        %v1069 = vperm.slane %v739, 4
        %v1070 = vperm.slane %v740, 4
        %v1071 = vperm.slane %v741, 4
        %v1072 = vmul.f32 %v1066, %v1068
        %v1073 = vmul.f32 %v1066, %v1069
        %v1074 = vmul.f32 %v1066, %v1070
        %v1075 = vmul.f32 %v1066, %v1071
        %v1076 = vadd.f32 %v1060, %v1072
        %v1077 = vadd.f32 %v1061, %v1073
        %v1078 = vadd.f32 %v1062, %v1074
        %v1079 = vadd.f32 %v1063, %v1075
        %1080 = vset.pattern.permute.xlu0 21
        %1081 = vperm.xlu0 %1080, %v746
        %v1082 = vpop.permute.xlu0 %1081
        %v1084 = vperm.slane %v738, 5
        %v1085 = vperm.slane %v739, 5
        %v1086 = vperm.slane %v740, 5
        %v1087 = vperm.slane %v741, 5
        %v1088 = vmul.f32 %v1082, %v1084
        %v1089 = vmul.f32 %v1082, %v1085
        %v1090 = vmul.f32 %v1082, %v1086
        %v1091 = vmul.f32 %v1082, %v1087
        %v1092 = vadd.f32 %v1076, %v1088
        %v1093 = vadd.f32 %v1077, %v1089
        %v1094 = vadd.f32 %v1078, %v1090
        %v1095 = vadd.f32 %v1079, %v1091
        %1096 = vset.pattern.permute.xlu0 22
        %1097 = vperm.xlu0 %1096, %v746
        %v1098 = vpop.permute.xlu0 %1097
        %v1100 = vperm.slane %v738, 6
        %v1101 = vperm.slane %v739, 6
        %v1102 = vperm.slane %v740, 6
        %v1103 = vperm.slane %v741, 6
        %v1104 = vmul.f32 %v1098, %v1100
        %v1105 = vmul.f32 %v1098, %v1101
        %v1106 = vmul.f32 %v1098, %v1102
        %v1107 = vmul.f32 %v1098, %v1103
        %v1108 = vadd.f32 %v1092, %v1104
        %v1109 = vadd.f32 %v1093, %v1105
        %v1110 = vadd.f32 %v1094, %v1106
        %v1111 = vadd.f32 %v1095, %v1107
        %1112 = vset.pattern.permute.xlu0 23
        %1113 = vperm.xlu0 %1112, %v746
        %v1114 = vpop.permute.xlu0 %1113
        %v1116 = vperm.slane %v738, 7
        %v1117 = vperm.slane %v739, 7
        %v1118 = vperm.slane %v740, 7
        %v1119 = vperm.slane %v741, 7
        %v1120 = vmul.f32 %v1114, %v1116
        %v1121 = vmul.f32 %v1114, %v1117
        %v1122 = vmul.f32 %v1114, %v1118
        %v1123 = vmul.f32 %v1114, %v1119
        %v1124 = vadd.f32 %v1108, %v1120
        %v1125 = vadd.f32 %v1109, %v1121
        %v1126 = vadd.f32 %v1110, %v1122
        %v1127 = vadd.f32 %v1111, %v1123
        %1128 = vset.pattern.permute.xlu0 24
        %1129 = vperm.xlu0 %1128, %v746
        %v1130 = vpop.permute.xlu0 %1129
        %v1132 = vperm.slane %v742, 0
        %v1133 = vperm.slane %v743, 0
        %v1134 = vperm.slane %v744, 0
        %v1135 = vperm.slane %v745, 0
        %v1136 = vmul.f32 %v1130, %v1132
        %v1137 = vmul.f32 %v1130, %v1133
        %v1138 = vmul.f32 %v1130, %v1134
        %v1139 = vmul.f32 %v1130, %v1135
        %v1140 = vadd.f32 %v1124, %v1136
        %v1141 = vadd.f32 %v1125, %v1137
        %v1142 = vadd.f32 %v1126, %v1138
        %v1143 = vadd.f32 %v1127, %v1139
        %1144 = vset.pattern.permute.xlu0 25
        %1145 = vperm.xlu0 %1144, %v746
        %v1146 = vpop.permute.xlu0 %1145
        %v1148 = vperm.slane %v742, 1
        %v1149 = vperm.slane %v743, 1
        %v1150 = vperm.slane %v744, 1
        %v1151 = vperm.slane %v745, 1
        %v1152 = vmul.f32 %v1146, %v1148
        %v1153 = vmul.f32 %v1146, %v1149
        %v1154 = vmul.f32 %v1146, %v1150
        %v1155 = vmul.f32 %v1146, %v1151
        %v1156 = vadd.f32 %v1140, %v1152
        %v1157 = vadd.f32 %v1141, %v1153
        %v1158 = vadd.f32 %v1142, %v1154
        %v1159 = vadd.f32 %v1143, %v1155
        %1160 = vset.pattern.permute.xlu0 26
        %1161 = vperm.xlu0 %1160, %v746
        %v1162 = vpop.permute.xlu0 %1161
        %v1164 = vperm.slane %v742, 2
        %v1165 = vperm.slane %v743, 2
        %v1166 = vperm.slane %v744, 2
        %v1167 = vperm.slane %v745, 2
        %v1168 = vmul.f32 %v1162, %v1164
        %v1169 = vmul.f32 %v1162, %v1165
        %v1170 = vmul.f32 %v1162, %v1166
        %v1171 = vmul.f32 %v1162, %v1167
        %v1172 = vadd.f32 %v1156, %v1168
        %v1173 = vadd.f32 %v1157, %v1169
        %v1174 = vadd.f32 %v1158, %v1170
        %v1175 = vadd.f32 %v1159, %v1171
        %1176 = vset.pattern.permute.xlu0 27
        %1177 = vperm.xlu0 %1176, %v746
        %v1178 = vpop.permute.xlu0 %1177
        %v1180 = vperm.slane %v742, 3
        %v1181 = vperm.slane %v743, 3
        %v1182 = vperm.slane %v744, 3
        %v1183 = vperm.slane %v745, 3
        %v1184 = vmul.f32 %v1178, %v1180
        %v1185 = vmul.f32 %v1178, %v1181
        %v1186 = vmul.f32 %v1178, %v1182
        %v1187 = vmul.f32 %v1178, %v1183
        %v1188 = vadd.f32 %v1172, %v1184
        %v1189 = vadd.f32 %v1173, %v1185
        %v1190 = vadd.f32 %v1174, %v1186
        %v1191 = vadd.f32 %v1175, %v1187
        %1192 = vset.pattern.permute.xlu0 28
        %1193 = vperm.xlu0 %1192, %v746
        %v1194 = vpop.permute.xlu0 %1193
        %v1196 = vperm.slane %v742, 4
        %v1197 = vperm.slane %v743, 4
        %v1198 = vperm.slane %v744, 4
        %v1199 = vperm.slane %v745, 4
        %v1200 = vmul.f32 %v1194, %v1196
        %v1201 = vmul.f32 %v1194, %v1197
        %v1202 = vmul.f32 %v1194, %v1198
        %v1203 = vmul.f32 %v1194, %v1199
        %v1204 = vadd.f32 %v1188, %v1200
        %v1205 = vadd.f32 %v1189, %v1201
        %v1206 = vadd.f32 %v1190, %v1202
        %v1207 = vadd.f32 %v1191, %v1203
        %1208 = vset.pattern.permute.xlu0 29
        %1209 = vperm.xlu0 %1208, %v746
        %v1210 = vpop.permute.xlu0 %1209
        %v1212 = vperm.slane %v742, 5
        %v1213 = vperm.slane %v743, 5
        %v1214 = vperm.slane %v744, 5
        %v1215 = vperm.slane %v745, 5
        %v1216 = vmul.f32 %v1210, %v1212
        %v1217 = vmul.f32 %v1210, %v1213
        %v1218 = vmul.f32 %v1210, %v1214
        %v1219 = vmul.f32 %v1210, %v1215
        %v1220 = vadd.f32 %v1204, %v1216
        %v1221 = vadd.f32 %v1205, %v1217
        %v1222 = vadd.f32 %v1206, %v1218
        %v1223 = vadd.f32 %v1207, %v1219
        %1224 = vset.pattern.permute.xlu0 30
        %1225 = vperm.xlu0 %1224, %v746
        %v1226 = vpop.permute.xlu0 %1225
        %v1228 = vperm.slane %v742, 6
        %v1229 = vperm.slane %v743, 6
        %v1230 = vperm.slane %v744, 6
        %v1231 = vperm.slane %v745, 6
        %v1232 = vmul.f32 %v1226, %v1228
        %v1233 = vmul.f32 %v1226, %v1229
        %v1234 = vmul.f32 %v1226, %v1230
        %v1235 = vmul.f32 %v1226, %v1231
        %v1236 = vadd.f32 %v1220, %v1232
        %v1237 = vadd.f32 %v1221, %v1233
        %v1238 = vadd.f32 %v1222, %v1234
        %v1239 = vadd.f32 %v1223, %v1235
        %1240 = vset.pattern.permute.xlu0 31
        %1241 = vperm.xlu0 %1240, %v746
        %v1242 = vpop.permute.xlu0 %1241
        %v1244 = vperm.slane %v742, 7
        %v1245 = vperm.slane %v743, 7
        %v1246 = vperm.slane %v744, 7
        %v1247 = vperm.slane %v745, 7
        %v1248 = vmul.f32 %v1242, %v1244
        %v1249 = vmul.f32 %v1242, %v1245
        %v1250 = vmul.f32 %v1242, %v1246
        %v1251 = vmul.f32 %v1242, %v1247
        %v1252 = vadd.f32 %v1236, %v1248
        %v1253 = vadd.f32 %v1237, %v1249
        %v1254 = vadd.f32 %v1238, %v1250
        %v1255 = vadd.f32 %v1239, %v1251
        %v1256 = vld [vmem:[%s6] sm:$0xf]
        %1258 = vset.pattern.permute.xlu0 0
        %1259 = vperm.xlu0 %1258, %v1256
        %v1260 = vpop.permute.xlu0 %1259
        %v1262 = vadd.f32 %v1252, %v1260
        %v1263 = vadd.f32 %v1253, %v1260
        %v1264 = vadd.f32 %v1254, %v1260
        %v1265 = vadd.f32 %v1255, %v1260
        %v1270 = vrot.slane %v1263, 4
        %v1271 = vrot.slane %v1265, 4
        %vm1272 = vcmask 1043456
        %v1273 = vsel %vm1272, %v1262, %v1270
        %v1274 = vsel %vm1272, %v1264, %v1271
        %1277 = vst [vmem:[%s296] sm:$0xff] %v1273
        %1278 = vst [vmem:[%s296 + $0x8] sm:$0xff] %v1274
        %s1279 = sand.u32 %s197, 1
        %s1280 = scalar_lea.sflag [#allocation3], %s1279
        %s1281 = sand.u32 %s197, 1
        %s1282 = smul.addr %s1281, 16
        %s1283 = scalar_lea.vmem [#allocation2], %s1282
        // Predicated region
        $region49: #{tpu_custom_call.1} parent=47 // pred_check
          %p1284 = pneg %p207
        $region50: #{tpu_custom_call.1} parent=47 // pred_check_branch
          %1286 = sbr.rel (%p1284) target = $region52
        $region51: #{tpu_custom_call.1} parent=47 // pred_region
          %s1287 = smul.u32 4, %s26
          %1289 = vsyncadd %s1280, 0
          %s1290 = smul.addr %s25, 4
          %s1291 = sadd.s32 %s1287, %s1290
          %s1292 = smul.addr %s1291, 4
          %s1293 = scalar_lea.hbm %s7, %s1292
          %s1295 = sshll.u32 %s1283, 4
          %s1296 = int_to_ptr.vmem [resolvable:$true] %s1295
          %s1297 = sshll.u32 %s1293, 4
          %s1298 = int_to_ptr.hbm [resolvable:$true] %s1297
          %1300 = dma.vmem_to_hbm [thread:$0]  %s1296, 256, %s1298, %s1280
        $region52: #{tpu_custom_call.1} parent=47 // pred_fallthru
          _
      $region48: #{tpu_custom_call.1} parent=5 // pred_fallthru
        _
      %p1301 = scmp.le.s32.totalorder 2, %s16
      // Predicated region
      $region53: #{tpu_custom_call.1} parent=5 // pred_check
        %p1302 = pneg %p1301
      $region54: #{tpu_custom_call.1} parent=5 // pred_check_branch
        %1304 = sbr.rel (%p1302) target = $region56
      $region55: #{tpu_custom_call.1} parent=5 // pred_region
        %s1305 = ssub.s32 %s16, 2
        // Predicated region
        $region57: #{tpu_custom_call.1} parent=55 // pred_check
          %p1306 = pneg %p213
        $region58: #{tpu_custom_call.1} parent=55 // pred_check_branch
          %1308 = sbr.rel (%p1306) target = $region60
        $region59: #{tpu_custom_call.1} parent=55 // pred_region
          %s1309 = sand.u32 %s198, 1
          %s1310 = scalar_lea.sflag [#allocation3], %s1309
          %s1311 = sand.u32 %s198, 1
          %s1312 = smul.addr %s1311, 16
          %s1313 = scalar_lea.vmem [#allocation2], %s1312
          %1315 = dma.done %s1310, 256
        $region60: #{tpu_custom_call.1} parent=55 // pred_fallthru
          _
      $region56: #{tpu_custom_call.1} parent=5 // pred_fallthru
        _
    $region6: #{tpu_custom_call.1} parent=1 // loop_footer
      %s20 = sadd.s32 1, %s16
    $region7: #{tpu_custom_call.1} parent=1 // loop_footer_branch
      %15 = sbr.rel target = $region3
    $region8: #{tpu_custom_call.1} parent=1 // loop_exit
      _
    %1316 = vsyncpa [#allocation3], 1
    %s1317 = scalar_lea.sflag [#allocation3], 1
    %1318 = vsyncpa %s1317, 1

</llo_original>
